<compile_context>
chip_gen: v6e
topology: v6e:2x2x1
jax: 0.10.0
libtpu: 0.0.40
codegen_flags: <defaults>
</compile_context>

<pallas_src>
import functools
import math

import jax
import jax.numpy as jnp
from jax.experimental import pallas as pl
from jax.experimental.pallas import tpu as pltpu

BATCH_NORM_EPSILON = 1e-05
_VMEM_LIMIT = 64 * 1024 * 1024  # generous headroom; toy shapes use far less


# ----------------------------------------------------------------------------
# Shared BN helper (runs inside kernels, all f32)
# ----------------------------------------------------------------------------
def _bn_scale_shift(psum, psumsq, gamma, beta, count, eps):
    """Per-channel (scale, shift) for training-mode BatchNorm.

    psum / psumsq : (N, C, 1) per-batch partial sums (reduced over N here)
    gamma / beta  : (C, 1)
    """
    tot = jnp.sum(psum, axis=0)                # (C, 1)
    tot2 = jnp.sum(psumsq, axis=0)             # (C, 1)
    inv_n = 1.0 / count
    mean = tot * inv_n
    var = jnp.maximum(tot2 * inv_n - mean * mean, 0.0)   # clamp cancellation
    scale = gamma * jax.lax.rsqrt(var + eps)
    shift = beta - mean * scale
    return scale, shift


# ----------------------------------------------------------------------------
# Kernel 1: [previous block's BN + ReLU] -> 3x3 conv (single im2col MXU dot)
#           -> raw conv output + per-batch channel sum / sum-of-squares.
# ----------------------------------------------------------------------------
def conv3x3_kernel(*refs, H, W, Cin, Cout, count, eps, apply_bn):
    if apply_bn:
        (x_ref, psum_ref, psumsq_ref, gamma_ref, beta_ref, mask_ref, w_ref,
         y_ref, osum_ref, osumsq_ref, col_sc) = refs
    else:
        (x_ref, mask_ref, w_ref,
         y_ref, osum_ref, osumsq_ref, col_sc) = refs

    HW = H * W
    x = x_ref[0].astype(jnp.float32)                    # (Cin, HW)  lane-dense
    if apply_bn:
        scale, shift = _bn_scale_shift(psum_ref[...], psumsq_ref[...],
                                       gamma_ref[...], beta_ref[...],
                                       count, eps)       # (Cin, 1) each
        x = jnp.maximum(x * scale + shift, 0.0)          # fused BN + ReLU

    # im2col via lane rolls + boundary masks:
    #   col_sc[(kh*3+kw)*Cin + c, h*W + w] = x[c, (h+kh-1)*W + (w+kw-1)]
    #   (zero when the tap falls outside the image -> the '1-pixel pad').
    for kh in range(3):
        for kw in range(3):
            idx = kh * 3 + kw
            k = (kh - 1) * W + (kw - 1)
            if k == 0:
                tap = x                                  # center tap, no mask
            else:
                tap = pltpu.roll(x, shift=(-k) % HW, axis=1)
                tap = tap * mask_ref[idx:idx + 1, :]     # zero out-of-image taps
            col_sc[idx * Cin:(idx + 1) * Cin, :] = tap

    # One MXU dot, K = 9*Cin, bf16 operands, f32 accumulation.
    acc = jnp.dot(w_ref[...], col_sc[...].astype(jnp.bfloat16),
                  preferred_element_type=jnp.float32)    # (Cout, HW)
    y_ref[0] = acc.astype(y_ref.dtype)

    # Per-batch BN statistics, consumed (and reduced over N) by the next kernel.
    osum_ref[0] = jnp.sum(acc, axis=1, keepdims=True)           # (Cout, 1)
    osumsq_ref[0] = jnp.sum(acc * acc, axis=1, keepdims=True)   # (Cout, 1)


# ----------------------------------------------------------------------------
# Kernel 2: [last block's BN + ReLU] -> final 1x1 conv (with bias)
# ----------------------------------------------------------------------------
def conv1x1_kernel(*refs, count, eps, apply_bn):
    if apply_bn:
        (x_ref, psum_ref, psumsq_ref, gamma_ref, beta_ref, w_ref, b_ref,
         o_ref) = refs
    else:
        x_ref, w_ref, b_ref, o_ref = refs

    x = x_ref[0].astype(jnp.float32)                     # (Cin, THW)
    if apply_bn:
        scale, shift = _bn_scale_shift(psum_ref[...], psumsq_ref[...],
                                       gamma_ref[...], beta_ref[...],
                                       count, eps)
        x = jnp.maximum(x * scale + shift, 0.0)          # fused BN + ReLU

    acc = jnp.dot(w_ref[...], x.astype(jnp.bfloat16),
                  preferred_element_type=jnp.float32)    # (Cout, THW)
    o_ref[0] = (acc + b_ref[...]).astype(o_ref.dtype)


# ----------------------------------------------------------------------------
# Wrappers
# ----------------------------------------------------------------------------
def _tap_masks(H, W):
    """(9, H*W) validity masks for the 3x3 taps (compile-time constants)."""
    hh = jnp.arange(H, dtype=jnp.int32).reshape(H, 1)
    ww = jnp.arange(W, dtype=jnp.int32).reshape(1, W)
    rows = []
    for kh in range(3):
        for kw in range(3):
            dh, dw = kh - 1, kw - 1
            m = ((hh + dh >= 0) & (hh + dh < H) &
                 (ww + dw >= 0) & (ww + dw < W))
            rows.append(m.astype(jnp.float32).reshape(1, H * W))
    return jnp.concatenate(rows, axis=0)


def conv3x3_block(x, prev_stats, w_mat, H, W):
    """One ConvBatchNormBlock step in the fused pipeline.

    Applies the *previous* block's BN+ReLU (if prev_stats is given), then this
    block's 3x3 conv.  Returns (raw conv output, per-batch sums, sums-of-sq).
    """
    N, Cin, HW = x.shape
    Cout = w_mat.shape[0]
    apply_bn = prev_stats is not None
    count = float(N * HW)
    masks = _tap_masks(H, W)

    in_specs = [pl.BlockSpec((1, Cin, HW), lambda b: (b, 0, 0))]
    args = [x]
    if apply_bn:
        psum, psumsq, gamma, beta = prev_stats
        in_specs += [
            pl.BlockSpec((N, Cin, 1), lambda b: (0, 0, 0)),
            pl.BlockSpec((N, Cin, 1), lambda b: (0, 0, 0)),
            pl.BlockSpec((Cin, 1), lambda b: (0, 0)),
            pl.BlockSpec((Cin, 1), lambda b: (0, 0)),
        ]
        args += [psum, psumsq, gamma, beta]
    in_specs += [
        pl.BlockSpec((9, HW), lambda b: (0, 0)),
        pl.BlockSpec((Cout, 9 * Cin), lambda b: (0, 0)),
    ]
    args += [masks, w_mat]

    kern = functools.partial(conv3x3_kernel, H=H, W=W, Cin=Cin, Cout=Cout,
                             count=count, eps=BATCH_NORM_EPSILON,
                             apply_bn=apply_bn)
    cost = pl.CostEstimate(
        flops=2 * N * HW * 9 * Cin * Cout,
        transcendentals=0,
        bytes_accessed=4 * (x.size + N * Cout * HW) + 2 * w_mat.size)

    y, osum, osumsq = pl.pallas_call(
        kern,
        grid=(N,),
        in_specs=in_specs,
        out_specs=[
            pl.BlockSpec((1, Cout, HW), lambda b: (b, 0, 0)),
            pl.BlockSpec((1, Cout, 1), lambda b: (b, 0, 0)),
            pl.BlockSpec((1, Cout, 1), lambda b: (b, 0, 0)),
        ],
        out_shape=(
            jax.ShapeDtypeStruct((N, Cout, HW), jnp.float32),
            jax.ShapeDtypeStruct((N, Cout, 1), jnp.float32),
            jax.ShapeDtypeStruct((N, Cout, 1), jnp.float32),
        ),
        scratch_shapes=[pltpu.VMEM((9 * Cin, HW), jnp.float32)],
        compiler_params=pltpu.CompilerParams(
            dimension_semantics=("parallel",),
            vmem_limit_bytes=_VMEM_LIMIT),
        cost_estimate=cost,
    )(*args)
    return y, osum, osumsq


def final_conv1x1(x, prev_stats, w_mat, bias, H, W):
    """Fused [last block's BN + ReLU] + 1x1 conv, tiled over (batch, HW tiles)."""
    N, Cin, HW = x.shape
    Cout = w_mat.shape[0]
    apply_bn = prev_stats is not None
    count = float(N * HW)
    thw = HW if HW <= 2048 else 2048          # lane tile (multiple of 128 if partial)
    grid = (N, pl.cdiv(HW, thw))

    in_specs = [pl.BlockSpec((1, Cin, thw), lambda b, t: (b, 0, t))]
    args = [x]
    if apply_bn:
        psum, psumsq, gamma, beta = prev_stats
        in_specs += [
            pl.BlockSpec((N, Cin, 1), lambda b, t: (0, 0, 0)),
            pl.BlockSpec((N, Cin, 1), lambda b, t: (0, 0, 0)),
            pl.BlockSpec((Cin, 1), lambda b, t: (0, 0)),
            pl.BlockSpec((Cin, 1), lambda b, t: (0, 0)),
        ]
        args += [psum, psumsq, gamma, beta]
    in_specs += [
        pl.BlockSpec((Cout, Cin), lambda b, t: (0, 0)),
        pl.BlockSpec((Cout, 1), lambda b, t: (0, 0)),
    ]
    args += [w_mat, bias]

    kern = functools.partial(conv1x1_kernel, count=count,
                             eps=BATCH_NORM_EPSILON, apply_bn=apply_bn)
    cost = pl.CostEstimate(
        flops=2 * N * HW * Cin * Cout,
        transcendentals=0,
        bytes_accessed=4 * (x.size + N * Cout * HW))

    y = pl.pallas_call(
        kern,
        grid=grid,
        in_specs=in_specs,
        out_specs=pl.BlockSpec((1, Cout, thw), lambda b, t: (b, 0, t)),
        out_shape=jax.ShapeDtypeStruct((N, Cout, HW), jnp.float32),
        compiler_params=pltpu.CompilerParams(
            dimension_semantics=("parallel", "parallel"),
            vmem_limit_bytes=_VMEM_LIMIT),
        cost_estimate=cost,
    )(*args)
    return y


# ----------------------------------------------------------------------------
# Parameter init (matches the PyTorch module's init) and forward
# ----------------------------------------------------------------------------
def _xavier_uniform(key, shape_oihw):
    cout, cin, kh, kw = shape_oihw
    fan_in = cin * kh * kw
    fan_out = cout * kh * kw
    bound = math.sqrt(6.0 / (fan_in + fan_out))
    return jax.random.uniform(key, shape_oihw, jnp.float32, -bound, bound)


def init_scale_output_params(key, channels):
    assert len(channels) >= 2
    params = {"blocks": [], "final": None}
    n_blocks = len(channels) - 2
    keys = jax.random.split(key, n_blocks + 2)
    for i in range(n_blocks):
        cin, cout = channels[i], channels[i + 1]
        w = _xavier_uniform(keys[i], (cout, cin, 3, 3))           # torch OIHW
        # (Cout, Cin, 3, 3) -> (Cout, 3, 3, Cin) -> (Cout, 9*Cin); bf16 MXU operand
        w_mat = jnp.transpose(w, (0, 2, 3, 1)).reshape(cout, 9 * cin)
        params["blocks"].append({
            "w": w_mat.astype(jnp.bfloat16),
            "gamma": jnp.ones((cout, 1), jnp.float32),            # BN affine init
            "beta": jnp.zeros((cout, 1), jnp.float32),
        })
    cin, cout = channels[-2], channels[-1]
    w = _xavier_uniform(keys[-2], (cout, cin, 1, 1))
    b_bound = 1.0 / math.sqrt(cin)                                # torch default bias init
    bias = jax.random.uniform(keys[-1], (cout, 1), jnp.float32, -b_bound, b_bound)
    params["final"] = {"w": w[:, :, 0, 0].astype(jnp.bfloat16),   # (Cout, Cin)
                       "b": bias}
    return params


@jax.jit
def scale_output_forward(x_nchw, params):
    N, C, H, W = x_nchw.shape
    # NCHW -> (N, C, H*W): a pure reshape (no transpose); H*W lives on lanes.
    x = x_nchw.reshape(N, C, H * W).astype(jnp.float32)
    stats = None          # (psum, psumsq, gamma, beta) of the pending BatchNorm
    for blk in params["blocks"]:
        x, psum, psumsq = conv3x3_block(x, stats, blk["w"], H, W)
        stats = (psum, psumsq, blk["gamma"], blk["beta"])
    y = final_conv1x1(x, stats, params["final"]["w"], params["final"]["b"], H, W)
    return y.reshape(N, -1, H, W)                                 # back to NCHW


if __name__ == "__main__":
    N, H, W = 2, 16, 16
    channels = (4, 8, 8, 3)   # c1 == input C, last == number of classes

    key = jax.random.PRNGKey(0)
    k_x, k_p = jax.random.split(key)
    x = jax.random.normal(k_x, (N, channels[0], H, W), jnp.float32)
    params = init_scale_output_params(k_p, channels)

    out = scale_output_forward(x, params)
    jax.block_until_ready(out)
    assert out.shape == (N, channels[-1], H, W), out.shape
    print("KERNEL_OK")
</pallas_src>

<mosaic_0001>
module attributes {stable_mosaic.version = 11 : i64} {
  func.func @conv3x3_kernel(%arg0: i32, %arg1: memref<1x4x256xf32, #tpu.memory_space<vmem>>, %arg2: memref<9x256xf32, #tpu.memory_space<vmem>>, %arg3: memref<8x36xbf16, #tpu.memory_space<vmem>>, %arg4: memref<1x8x256xf32, #tpu.memory_space<vmem>>, %arg5: memref<1x8x1xf32, #tpu.memory_space<vmem>>, %arg6: memref<1x8x1xf32, #tpu.memory_space<vmem>>, %arg7: memref<36x256xf32, #tpu.memory_space<vmem>>) attributes {dimension_semantics = [#tpu.dimension_semantics<parallel>], iteration_bounds = array<i64: 2>, scalar_prefetch = 0 : i64, scratch_operands = 1 : i64, tpu.core_type = #tpu.core_type<tc>, window_params = [{transform_indices = @transform_0, window_bounds = array<i64: 1, 4, 256>}, {pipeline_mode = #tpu.pipeline_mode<synchronous>, transform_indices = @transform_1, window_bounds = array<i64: 9, 256>}, {pipeline_mode = #tpu.pipeline_mode<synchronous>, transform_indices = @transform_2, window_bounds = array<i64: 8, 36>}, {transform_indices = @transform_3, window_bounds = array<i64: 1, 8, 256>}, {transform_indices = @transform_4, window_bounds = array<i64: 1, 8, 1>}, {transform_indices = @transform_5, window_bounds = array<i64: 1, 8, 1>}]} {
    %c0 = arith.constant 0 : index
    %c0_0 = arith.constant 0 : index
    %c0_1 = arith.constant 0 : index
    %0 = vector.load %arg1[%c0, %c0_0, %c0_1] : memref<1x4x256xf32, #tpu.memory_space<vmem>>, vector<1x4x256xf32>
    %1 = vector.shape_cast %0 : vector<1x4x256xf32> to vector<4x256xf32>
    %c17_i32 = arith.constant 17 : i32
    %2 = tpu.dynamic_rotate %1 by %c17_i32 dim 1 : vector<4x256xf32>, i32 -> vector<4x256xf32>
    %c0_2 = arith.constant 0 : index
    %c0_3 = arith.constant 0 : index
    %3 = vector.load %arg2[%c0_2, %c0_3] : memref<9x256xf32, #tpu.memory_space<vmem>>, vector<1x256xf32>
    %4 = vector.broadcast %3 : vector<1x256xf32> to vector<4x256xf32>
    %5 = arith.mulf %2, %4 : vector<4x256xf32>
    %c0_4 = arith.constant 0 : index
    %c0_5 = arith.constant 0 : index
    %6 = vector.load %arg7[%c0_4, %c0_5] : memref<36x256xf32, #tpu.memory_space<vmem>>, vector<4x256xf32>
    tpu.vector_store %arg7[%c0_4, %c0_5], %5 {strides = array<i32>} : memref<36x256xf32, #tpu.memory_space<vmem>>, vector<4x256xf32>,
    %c16_i32 = arith.constant 16 : i32
    %7 = tpu.dynamic_rotate %1 by %c16_i32 dim 1 : vector<4x256xf32>, i32 -> vector<4x256xf32>
    %c1 = arith.constant 1 : index
    %c0_6 = arith.constant 0 : index
    %8 = vector.load %arg2[%c1, %c0_6] : memref<9x256xf32, #tpu.memory_space<vmem>>, vector<1x256xf32>
    %9 = vector.broadcast %8 : vector<1x256xf32> to vector<4x256xf32>
    %10 = arith.mulf %7, %9 : vector<4x256xf32>
    %c4 = arith.constant 4 : index
    %c0_7 = arith.constant 0 : index
    %11 = vector.load %arg7[%c4, %c0_7] : memref<36x256xf32, #tpu.memory_space<vmem>>, vector<4x256xf32>
    tpu.vector_store %arg7[%c4, %c0_7], %10 {strides = array<i32>} : memref<36x256xf32, #tpu.memory_space<vmem>>, vector<4x256xf32>,
    %c15_i32 = arith.constant 15 : i32
    %12 = tpu.dynamic_rotate %1 by %c15_i32 dim 1 : vector<4x256xf32>, i32 -> vector<4x256xf32>
    %c2 = arith.constant 2 : index
    %c0_8 = arith.constant 0 : index
    %13 = vector.load %arg2[%c2, %c0_8] : memref<9x256xf32, #tpu.memory_space<vmem>>, vector<1x256xf32>
    %14 = vector.broadcast %13 : vector<1x256xf32> to vector<4x256xf32>
    %15 = arith.mulf %12, %14 : vector<4x256xf32>
    %c8 = arith.constant 8 : index
    %c0_9 = arith.constant 0 : index
    %16 = vector.load %arg7[%c8, %c0_9] : memref<36x256xf32, #tpu.memory_space<vmem>>, vector<4x256xf32>
    tpu.vector_store %arg7[%c8, %c0_9], %15 {strides = array<i32>} : memref<36x256xf32, #tpu.memory_space<vmem>>, vector<4x256xf32>,
    %c1_i32 = arith.constant 1 : i32
    %17 = tpu.dynamic_rotate %1 by %c1_i32 dim 1 : vector<4x256xf32>, i32 -> vector<4x256xf32>
    %c3 = arith.constant 3 : index
    %c0_10 = arith.constant 0 : index
    %18 = vector.load %arg2[%c3, %c0_10] : memref<9x256xf32, #tpu.memory_space<vmem>>, vector<1x256xf32>
    %19 = vector.broadcast %18 : vector<1x256xf32> to vector<4x256xf32>
    %20 = arith.mulf %17, %19 : vector<4x256xf32>
    %c12 = arith.constant 12 : index
    %c0_11 = arith.constant 0 : index
    %21 = vector.load %arg7[%c12, %c0_11] : memref<36x256xf32, #tpu.memory_space<vmem>>, vector<4x256xf32>
    tpu.vector_store %arg7[%c12, %c0_11], %20 {strides = array<i32>} : memref<36x256xf32, #tpu.memory_space<vmem>>, vector<4x256xf32>,
    %c16 = arith.constant 16 : index
    %c0_12 = arith.constant 0 : index
    %22 = vector.load %arg7[%c16, %c0_12] : memref<36x256xf32, #tpu.memory_space<vmem>>, vector<4x256xf32>
    tpu.vector_store %arg7[%c16, %c0_12], %1 {strides = array<i32>} : memref<36x256xf32, #tpu.memory_space<vmem>>, vector<4x256xf32>,
    %c255_i32 = arith.constant 255 : i32
    %23 = tpu.dynamic_rotate %1 by %c255_i32 dim 1 : vector<4x256xf32>, i32 -> vector<4x256xf32>
    %c5 = arith.constant 5 : index
    %c0_13 = arith.constant 0 : index
    %24 = vector.load %arg2[%c5, %c0_13] : memref<9x256xf32, #tpu.memory_space<vmem>>, vector<1x256xf32>
    %25 = vector.broadcast %24 : vector<1x256xf32> to vector<4x256xf32>
    %26 = arith.mulf %23, %25 : vector<4x256xf32>
    %c20 = arith.constant 20 : index
    %c0_14 = arith.constant 0 : index
    %27 = vector.load %arg7[%c20, %c0_14] : memref<36x256xf32, #tpu.memory_space<vmem>>, vector<4x256xf32>
    tpu.vector_store %arg7[%c20, %c0_14], %26 {strides = array<i32>} : memref<36x256xf32, #tpu.memory_space<vmem>>, vector<4x256xf32>,
    %c241_i32 = arith.constant 241 : i32
    %28 = tpu.dynamic_rotate %1 by %c241_i32 dim 1 : vector<4x256xf32>, i32 -> vector<4x256xf32>
    %c6 = arith.constant 6 : index
    %c0_15 = arith.constant 0 : index
    %29 = vector.load %arg2[%c6, %c0_15] : memref<9x256xf32, #tpu.memory_space<vmem>>, vector<1x256xf32>
    %30 = vector.broadcast %29 : vector<1x256xf32> to vector<4x256xf32>
    %31 = arith.mulf %28, %30 : vector<4x256xf32>
    %c24 = arith.constant 24 : index
    %c0_16 = arith.constant 0 : index
    %32 = vector.load %arg7[%c24, %c0_16] : memref<36x256xf32, #tpu.memory_space<vmem>>, vector<4x256xf32>
    tpu.vector_store %arg7[%c24, %c0_16], %31 {strides = array<i32>} : memref<36x256xf32, #tpu.memory_space<vmem>>, vector<4x256xf32>,
    %c240_i32 = arith.constant 240 : i32
    %33 = tpu.dynamic_rotate %1 by %c240_i32 dim 1 : vector<4x256xf32>, i32 -> vector<4x256xf32>
    %c7 = arith.constant 7 : index
    %c0_17 = arith.constant 0 : index
    %34 = vector.load %arg2[%c7, %c0_17] : memref<9x256xf32, #tpu.memory_space<vmem>>, vector<1x256xf32>
    %35 = vector.broadcast %34 : vector<1x256xf32> to vector<4x256xf32>
    %36 = arith.mulf %33, %35 : vector<4x256xf32>
    %c28 = arith.constant 28 : index
    %c0_18 = arith.constant 0 : index
    %37 = vector.load %arg7[%c28, %c0_18] : memref<36x256xf32, #tpu.memory_space<vmem>>, vector<4x256xf32>
    tpu.vector_store %arg7[%c28, %c0_18], %36 {strides = array<i32>} : memref<36x256xf32, #tpu.memory_space<vmem>>, vector<4x256xf32>,
    %c239_i32 = arith.constant 239 : i32
    %38 = tpu.dynamic_rotate %1 by %c239_i32 dim 1 : vector<4x256xf32>, i32 -> vector<4x256xf32>
    %c8_19 = arith.constant 8 : index
    %c0_20 = arith.constant 0 : index
    %39 = vector.load %arg2[%c8_19, %c0_20] : memref<9x256xf32, #tpu.memory_space<vmem>>, vector<1x256xf32>
    %40 = vector.broadcast %39 : vector<1x256xf32> to vector<4x256xf32>
    %41 = arith.mulf %38, %40 : vector<4x256xf32>
    %c32 = arith.constant 32 : index
    %c0_21 = arith.constant 0 : index
    %42 = vector.load %arg7[%c32, %c0_21] : memref<36x256xf32, #tpu.memory_space<vmem>>, vector<4x256xf32>
    tpu.vector_store %arg7[%c32, %c0_21], %41 {strides = array<i32>} : memref<36x256xf32, #tpu.memory_space<vmem>>, vector<4x256xf32>,
    %c0_22 = arith.constant 0 : index
    %c0_23 = arith.constant 0 : index
    %43 = vector.load %arg3[%c0_22, %c0_23] : memref<8x36xbf16, #tpu.memory_space<vmem>>, vector<8x36xbf16>
    %c0_24 = arith.constant 0 : index
    %c0_25 = arith.constant 0 : index
    %44 = vector.load %arg7[%c0_24, %c0_25] : memref<36x256xf32, #tpu.memory_space<vmem>>, vector<36x256xf32>
    %45 = arith.truncf %44 : vector<36x256xf32> to vector<36x256xbf16>
    %cst = arith.constant dense<0.000000e+00> : vector<8x256xf32>
    %46 = tpu.matmul %43, %45, %cst {dimension_numbers = #tpu.dot_dimension_numbers<[1], [0], [0], [1], [0, 0, 1, 1], [], []>} : vector<8x36xbf16>, vector<36x256xbf16>, vector<8x256xf32> -> vector<8x256xf32>
    %c0_26 = arith.constant 0 : index
    %c0_27 = arith.constant 0 : index
    %c0_28 = arith.constant 0 : index
    %47 = vector.load %arg4[%c0_26, %c0_27, %c0_28] : memref<1x8x256xf32, #tpu.memory_space<vmem>>, vector<1x8x256xf32>
    %48 = vector.shape_cast %47 : vector<1x8x256xf32> to vector<8x256xf32>
    %49 = vector.shape_cast %46 : vector<8x256xf32> to vector<1x8x256xf32>
    tpu.vector_store %arg4[%c0_26, %c0_27, %c0_28], %49 {strides = array<i32>} : memref<1x8x256xf32, #tpu.memory_space<vmem>>, vector<1x8x256xf32>,
    %cst_29 = arith.constant dense<0.000000e+00> : vector<8xf32>
    %50 = vector.multi_reduction <add>, %46, %cst_29 [1] : vector<8x256xf32> to vector<8xf32>
    %51 = vector.shape_cast %50 : vector<8xf32> to vector<8x1xf32>
    %c0_30 = arith.constant 0 : index
    %c0_31 = arith.constant 0 : index
    %c0_32 = arith.constant 0 : index
    %52 = vector.load %arg5[%c0_30, %c0_31, %c0_32] : memref<1x8x1xf32, #tpu.memory_space<vmem>>, vector<1x8x1xf32>
    %53 = vector.shape_cast %52 : vector<1x8x1xf32> to vector<8x1xf32>
    %54 = vector.shape_cast %51 : vector<8x1xf32> to vector<1x8x1xf32>
    tpu.vector_store %arg5[%c0_30, %c0_31, %c0_32], %54 {strides = array<i32>} : memref<1x8x1xf32, #tpu.memory_space<vmem>>, vector<1x8x1xf32>,
    %55 = arith.mulf %46, %46 : vector<8x256xf32>
    %cst_33 = arith.constant dense<0.000000e+00> : vector<8xf32>
    %56 = vector.multi_reduction <add>, %55, %cst_33 [1] : vector<8x256xf32> to vector<8xf32>
    %57 = vector.shape_cast %56 : vector<8xf32> to vector<8x1xf32>
    %c0_34 = arith.constant 0 : index
    %c0_35 = arith.constant 0 : index
    %c0_36 = arith.constant 0 : index
    %58 = vector.load %arg6[%c0_34, %c0_35, %c0_36] : memref<1x8x1xf32, #tpu.memory_space<vmem>>, vector<1x8x1xf32>
    %59 = vector.shape_cast %58 : vector<1x8x1xf32> to vector<8x1xf32>
    %60 = vector.shape_cast %57 : vector<8x1xf32> to vector<1x8x1xf32>
    tpu.vector_store %arg6[%c0_34, %c0_35, %c0_36], %60 {strides = array<i32>} : memref<1x8x1xf32, #tpu.memory_space<vmem>>, vector<1x8x1xf32>,
    return
  }
  func.func @transform_0(%arg0: i32) -> (i32, i32, i32) {
    %c0_i32 = arith.constant 0 : i32
    %c0_i32_0 = arith.constant 0 : i32
    %c0_i32_1 = arith.constant 0 : i32
    return %arg0, %c0_i32, %c0_i32_0 : i32, i32, i32
  }
  func.func @transform_1(%arg0: i32) -> (i32, i32) {
    %c0_i32 = arith.constant 0 : i32
    %c0_i32_0 = arith.constant 0 : i32
    %c0_i32_1 = arith.constant 0 : i32
    return %c0_i32, %c0_i32_0 : i32, i32
  }
  func.func @transform_2(%arg0: i32) -> (i32, i32) {
    %c0_i32 = arith.constant 0 : i32
    %c0_i32_0 = arith.constant 0 : i32
    %c0_i32_1 = arith.constant 0 : i32
    return %c0_i32, %c0_i32_0 : i32, i32
  }
  func.func @transform_3(%arg0: i32) -> (i32, i32, i32) {
    %c0_i32 = arith.constant 0 : i32
    %c0_i32_0 = arith.constant 0 : i32
    %c0_i32_1 = arith.constant 0 : i32
    return %arg0, %c0_i32, %c0_i32_0 : i32, i32, i32
  }
  func.func @transform_4(%arg0: i32) -> (i32, i32, i32) {
    %c0_i32 = arith.constant 0 : i32
    %c0_i32_0 = arith.constant 0 : i32
    %c0_i32_1 = arith.constant 0 : i32
    return %arg0, %c0_i32, %c0_i32_0 : i32, i32, i32
  }
  func.func @transform_5(%arg0: i32) -> (i32, i32, i32) {
    %c0_i32 = arith.constant 0 : i32
    %c0_i32_0 = arith.constant 0 : i32
    %c0_i32_1 = arith.constant 0 : i32
    return %arg0, %c0_i32, %c0_i32_0 : i32, i32, i32
  }
}

module attributes {stable_mosaic.version = 11 : i64} {
  func.func @conv3x3_kernel(%arg0: i32, %arg1: memref<1x8x256xf32, #tpu.memory_space<vmem>>, %arg2: memref<2x8x1xf32, #tpu.memory_space<vmem>>, %arg3: memref<2x8x1xf32, #tpu.memory_space<vmem>>, %arg4: memref<8x1xf32, #tpu.memory_space<vmem>>, %arg5: memref<8x1xf32, #tpu.memory_space<vmem>>, %arg6: memref<9x256xf32, #tpu.memory_space<vmem>>, %arg7: memref<8x72xbf16, #tpu.memory_space<vmem>>, %arg8: memref<1x8x256xf32, #tpu.memory_space<vmem>>, %arg9: memref<1x8x1xf32, #tpu.memory_space<vmem>>, %arg10: memref<1x8x1xf32, #tpu.memory_space<vmem>>, %arg11: memref<72x256xf32, #tpu.memory_space<vmem>>) attributes {dimension_semantics = [#tpu.dimension_semantics<parallel>], iteration_bounds = array<i64: 2>, scalar_prefetch = 0 : i64, scratch_operands = 1 : i64, tpu.core_type = #tpu.core_type<tc>, window_params = [{transform_indices = @transform_0, window_bounds = array<i64: 1, 8, 256>}, {pipeline_mode = #tpu.pipeline_mode<synchronous>, transform_indices = @transform_1, window_bounds = array<i64: 2, 8, 1>}, {pipeline_mode = #tpu.pipeline_mode<synchronous>, transform_indices = @transform_2, window_bounds = array<i64: 2, 8, 1>}, {pipeline_mode = #tpu.pipeline_mode<synchronous>, transform_indices = @transform_3, window_bounds = array<i64: 8, 1>}, {pipeline_mode = #tpu.pipeline_mode<synchronous>, transform_indices = @transform_4, window_bounds = array<i64: 8, 1>}, {pipeline_mode = #tpu.pipeline_mode<synchronous>, transform_indices = @transform_5, window_bounds = array<i64: 9, 256>}, {pipeline_mode = #tpu.pipeline_mode<synchronous>, transform_indices = @transform_6, window_bounds = array<i64: 8, 72>}, {transform_indices = @transform_7, window_bounds = array<i64: 1, 8, 256>}, {transform_indices = @transform_8, window_bounds = array<i64: 1, 8, 1>}, {transform_indices = @transform_9, window_bounds = array<i64: 1, 8, 1>}]} {
    %c0 = arith.constant 0 : index
    %c0_0 = arith.constant 0 : index
    %c0_1 = arith.constant 0 : index
    %0 = vector.load %arg1[%c0, %c0_0, %c0_1] : memref<1x8x256xf32, #tpu.memory_space<vmem>>, vector<1x8x256xf32>
    %1 = vector.shape_cast %0 : vector<1x8x256xf32> to vector<8x256xf32>
    %c0_2 = arith.constant 0 : index
    %c0_3 = arith.constant 0 : index
    %c0_4 = arith.constant 0 : index
    %2 = vector.load %arg2[%c0_2, %c0_3, %c0_4] : memref<2x8x1xf32, #tpu.memory_space<vmem>>, vector<2x8x1xf32>
    %c0_5 = arith.constant 0 : index
    %c0_6 = arith.constant 0 : index
    %c0_7 = arith.constant 0 : index
    %3 = vector.load %arg3[%c0_5, %c0_6, %c0_7] : memref<2x8x1xf32, #tpu.memory_space<vmem>>, vector<2x8x1xf32>
    %c0_8 = arith.constant 0 : index
    %c0_9 = arith.constant 0 : index
    %4 = vector.load %arg4[%c0_8, %c0_9] : memref<8x1xf32, #tpu.memory_space<vmem>>, vector<8x1xf32>
    %c0_10 = arith.constant 0 : index
    %c0_11 = arith.constant 0 : index
    %5 = vector.load %arg5[%c0_10, %c0_11] : memref<8x1xf32, #tpu.memory_space<vmem>>, vector<8x1xf32>
    %cst = arith.constant dense<0.000000e+00> : vector<8x1xf32>
    %6 = vector.multi_reduction <add>, %2, %cst [0] : vector<2x8x1xf32> to vector<8x1xf32>
    %cst_12 = arith.constant dense<0.000000e+00> : vector<8x1xf32>
    %7 = vector.multi_reduction <add>, %3, %cst_12 [0] : vector<2x8x1xf32> to vector<8x1xf32>
    %cst_13 = arith.constant 0.001953125 : f32
    %8 = vector.broadcast %cst_13 : f32 to vector<8x1xf32>
    %9 = arith.mulf %6, %8 : vector<8x1xf32>
    %cst_14 = arith.constant 0.001953125 : f32
    %10 = vector.broadcast %cst_14 : f32 to vector<8x1xf32>
    %11 = arith.mulf %7, %10 : vector<8x1xf32>
    %12 = arith.mulf %9, %9 : vector<8x1xf32>
    %13 = arith.subf %11, %12 : vector<8x1xf32>
    %cst_15 = arith.constant 0.000000e+00 : f32
    %14 = vector.broadcast %cst_15 : f32 to vector<8x1xf32>
    %15 = arith.maximumf %13, %14 : vector<8x1xf32>
    %cst_16 = arith.constant 9.99999974E-6 : f32
    %16 = vector.broadcast %cst_16 : f32 to vector<8x1xf32>
    %17 = arith.addf %15, %16 : vector<8x1xf32>
    %18 = math.rsqrt %17 : vector<8x1xf32>
    %19 = arith.mulf %4, %18 : vector<8x1xf32>
    %20 = arith.mulf %9, %19 : vector<8x1xf32>
    %21 = arith.subf %5, %20 : vector<8x1xf32>
    %22 = vector.broadcast %19 : vector<8x1xf32> to vector<8x256xf32>
    %23 = arith.mulf %1, %22 : vector<8x256xf32>
    %24 = vector.broadcast %21 : vector<8x1xf32> to vector<8x256xf32>
    %25 = arith.addf %23, %24 : vector<8x256xf32>
    %cst_17 = arith.constant 0.000000e+00 : f32
    %26 = vector.broadcast %cst_17 : f32 to vector<8x256xf32>
    %27 = arith.maximumf %25, %26 : vector<8x256xf32>
    %c17_i32 = arith.constant 17 : i32
    %28 = tpu.dynamic_rotate %27 by %c17_i32 dim 1 : vector<8x256xf32>, i32 -> vector<8x256xf32>
    %c0_18 = arith.constant 0 : index
    %c0_19 = arith.constant 0 : index
    %29 = vector.load %arg6[%c0_18, %c0_19] : memref<9x256xf32, #tpu.memory_space<vmem>>, vector<1x256xf32>
    %30 = vector.broadcast %29 : vector<1x256xf32> to vector<8x256xf32>
    %31 = arith.mulf %28, %30 : vector<8x256xf32>
    %c0_20 = arith.constant 0 : index
    %c0_21 = arith.constant 0 : index
    %32 = vector.load %arg11[%c0_20, %c0_21] : memref<72x256xf32, #tpu.memory_space<vmem>>, vector<8x256xf32>
    tpu.vector_store %arg11[%c0_20, %c0_21], %31 {strides = array<i32>} : memref<72x256xf32, #tpu.memory_space<vmem>>, vector<8x256xf32>,
    %c16_i32 = arith.constant 16 : i32
    %33 = tpu.dynamic_rotate %27 by %c16_i32 dim 1 : vector<8x256xf32>, i32 -> vector<8x256xf32>
    %c1 = arith.constant 1 : index
    %c0_22 = arith.constant 0 : index
    %34 = vector.load %arg6[%c1, %c0_22] : memref<9x256xf32, #tpu.memory_space<vmem>>, vector<1x256xf32>
    %35 = vector.broadcast %34 : vector<1x256xf32> to vector<8x256xf32>
    %36 = arith.mulf %33, %35 : vector<8x256xf32>
    %c8 = arith.constant 8 : index
    %c0_23 = arith.constant 0 : index
    %37 = vector.load %arg11[%c8, %c0_23] : memref<72x256xf32, #tpu.memory_space<vmem>>, vector<8x256xf32>
    tpu.vector_store %arg11[%c8, %c0_23], %36 {strides = array<i32>} : memref<72x256xf32, #tpu.memory_space<vmem>>, vector<8x256xf32>,
    %c15_i32 = arith.constant 15 : i32
    %38 = tpu.dynamic_rotate %27 by %c15_i32 dim 1 : vector<8x256xf32>, i32 -> vector<8x256xf32>
    %c2 = arith.constant 2 : index
    %c0_24 = arith.constant 0 : index
    %39 = vector.load %arg6[%c2, %c0_24] : memref<9x256xf32, #tpu.memory_space<vmem>>, vector<1x256xf32>
    %40 = vector.broadcast %39 : vector<1x256xf32> to vector<8x256xf32>
    %41 = arith.mulf %38, %40 : vector<8x256xf32>
    %c16 = arith.constant 16 : index
    %c0_25 = arith.constant 0 : index
    %42 = vector.load %arg11[%c16, %c0_25] : memref<72x256xf32, #tpu.memory_space<vmem>>, vector<8x256xf32>
    tpu.vector_store %arg11[%c16, %c0_25], %41 {strides = array<i32>} : memref<72x256xf32, #tpu.memory_space<vmem>>, vector<8x256xf32>,
    %c1_i32 = arith.constant 1 : i32
    %43 = tpu.dynamic_rotate %27 by %c1_i32 dim 1 : vector<8x256xf32>, i32 -> vector<8x256xf32>
    %c3 = arith.constant 3 : index
    %c0_26 = arith.constant 0 : index
    %44 = vector.load %arg6[%c3, %c0_26] : memref<9x256xf32, #tpu.memory_space<vmem>>, vector<1x256xf32>
    %45 = vector.broadcast %44 : vector<1x256xf32> to vector<8x256xf32>
    %46 = arith.mulf %43, %45 : vector<8x256xf32>
    %c24 = arith.constant 24 : index
    %c0_27 = arith.constant 0 : index
    %47 = vector.load %arg11[%c24, %c0_27] : memref<72x256xf32, #tpu.memory_space<vmem>>, vector<8x256xf32>
    tpu.vector_store %arg11[%c24, %c0_27], %46 {strides = array<i32>} : memref<72x256xf32, #tpu.memory_space<vmem>>, vector<8x256xf32>,
    %c32 = arith.constant 32 : index
    %c0_28 = arith.constant 0 : index
    %48 = vector.load %arg11[%c32, %c0_28] : memref<72x256xf32, #tpu.memory_space<vmem>>, vector<8x256xf32>
    tpu.vector_store %arg11[%c32, %c0_28], %27 {strides = array<i32>} : memref<72x256xf32, #tpu.memory_space<vmem>>, vector<8x256xf32>,
    %c255_i32 = arith.constant 255 : i32
    %49 = tpu.dynamic_rotate %27 by %c255_i32 dim 1 : vector<8x256xf32>, i32 -> vector<8x256xf32>
    %c5 = arith.constant 5 : index
    %c0_29 = arith.constant 0 : index
    %50 = vector.load %arg6[%c5, %c0_29] : memref<9x256xf32, #tpu.memory_space<vmem>>, vector<1x256xf32>
    %51 = vector.broadcast %50 : vector<1x256xf32> to vector<8x256xf32>
    %52 = arith.mulf %49, %51 : vector<8x256xf32>
    %c40 = arith.constant 40 : index
    %c0_30 = arith.constant 0 : index
    %53 = vector.load %arg11[%c40, %c0_30] : memref<72x256xf32, #tpu.memory_space<vmem>>, vector<8x256xf32>
    tpu.vector_store %arg11[%c40, %c0_30], %52 {strides = array<i32>} : memref<72x256xf32, #tpu.memory_space<vmem>>, vector<8x256xf32>,
    %c241_i32 = arith.constant 241 : i32
    %54 = tpu.dynamic_rotate %27 by %c241_i32 dim 1 : vector<8x256xf32>, i32 -> vector<8x256xf32>
    %c6 = arith.constant 6 : index
    %c0_31 = arith.constant 0 : index
    %55 = vector.load %arg6[%c6, %c0_31] : memref<9x256xf32, #tpu.memory_space<vmem>>, vector<1x256xf32>
    %56 = vector.broadcast %55 : vector<1x256xf32> to vector<8x256xf32>
    %57 = arith.mulf %54, %56 : vector<8x256xf32>
    %c48 = arith.constant 48 : index
    %c0_32 = arith.constant 0 : index
    %58 = vector.load %arg11[%c48, %c0_32] : memref<72x256xf32, #tpu.memory_space<vmem>>, vector<8x256xf32>
    tpu.vector_store %arg11[%c48, %c0_32], %57 {strides = array<i32>} : memref<72x256xf32, #tpu.memory_space<vmem>>, vector<8x256xf32>,
    %c240_i32 = arith.constant 240 : i32
    %59 = tpu.dynamic_rotate %27 by %c240_i32 dim 1 : vector<8x256xf32>, i32 -> vector<8x256xf32>
    %c7 = arith.constant 7 : index
    %c0_33 = arith.constant 0 : index
    %60 = vector.load %arg6[%c7, %c0_33] : memref<9x256xf32, #tpu.memory_space<vmem>>, vector<1x256xf32>
    %61 = vector.broadcast %60 : vector<1x256xf32> to vector<8x256xf32>
    %62 = arith.mulf %59, %61 : vector<8x256xf32>
    %c56 = arith.constant 56 : index
    %c0_34 = arith.constant 0 : index
    %63 = vector.load %arg11[%c56, %c0_34] : memref<72x256xf32, #tpu.memory_space<vmem>>, vector<8x256xf32>
    tpu.vector_store %arg11[%c56, %c0_34], %62 {strides = array<i32>} : memref<72x256xf32, #tpu.memory_space<vmem>>, vector<8x256xf32>,
    %c239_i32 = arith.constant 239 : i32
    %64 = tpu.dynamic_rotate %27 by %c239_i32 dim 1 : vector<8x256xf32>, i32 -> vector<8x256xf32>
    %c8_35 = arith.constant 8 : index
    %c0_36 = arith.constant 0 : index
    %65 = vector.load %arg6[%c8_35, %c0_36] : memref<9x256xf32, #tpu.memory_space<vmem>>, vector<1x256xf32>
    %66 = vector.broadcast %65 : vector<1x256xf32> to vector<8x256xf32>
    %67 = arith.mulf %64, %66 : vector<8x256xf32>
    %c64 = arith.constant 64 : index
    %c0_37 = arith.constant 0 : index
    %68 = vector.load %arg11[%c64, %c0_37] : memref<72x256xf32, #tpu.memory_space<vmem>>, vector<8x256xf32>
    tpu.vector_store %arg11[%c64, %c0_37], %67 {strides = array<i32>} : memref<72x256xf32, #tpu.memory_space<vmem>>, vector<8x256xf32>,
    %c0_38 = arith.constant 0 : index
    %c0_39 = arith.constant 0 : index
    %69 = vector.load %arg7[%c0_38, %c0_39] : memref<8x72xbf16, #tpu.memory_space<vmem>>, vector<8x72xbf16>
    %c0_40 = arith.constant 0 : index
    %c0_41 = arith.constant 0 : index
    %70 = vector.load %arg11[%c0_40, %c0_41] : memref<72x256xf32, #tpu.memory_space<vmem>>, vector<72x256xf32>
    %71 = arith.truncf %70 : vector<72x256xf32> to vector<72x256xbf16>
    %cst_42 = arith.constant dense<0.000000e+00> : vector<8x256xf32>
    %72 = tpu.matmul %69, %71, %cst_42 {dimension_numbers = #tpu.dot_dimension_numbers<[1], [0], [0], [1], [0, 0, 1, 1], [], []>} : vector<8x72xbf16>, vector<72x256xbf16>, vector<8x256xf32> -> vector<8x256xf32>
    %c0_43 = arith.constant 0 : index
    %c0_44 = arith.constant 0 : index
    %c0_45 = arith.constant 0 : index
    %73 = vector.load %arg8[%c0_43, %c0_44, %c0_45] : memref<1x8x256xf32, #tpu.memory_space<vmem>>, vector<1x8x256xf32>
    %74 = vector.shape_cast %73 : vector<1x8x256xf32> to vector<8x256xf32>
    %75 = vector.shape_cast %72 : vector<8x256xf32> to vector<1x8x256xf32>
    tpu.vector_store %arg8[%c0_43, %c0_44, %c0_45], %75 {strides = array<i32>} : memref<1x8x256xf32, #tpu.memory_space<vmem>>, vector<1x8x256xf32>,
    %cst_46 = arith.constant dense<0.000000e+00> : vector<8xf32>
    %76 = vector.multi_reduction <add>, %72, %cst_46 [1] : vector<8x256xf32> to vector<8xf32>
    %77 = vector.shape_cast %76 : vector<8xf32> to vector<8x1xf32>
    %c0_47 = arith.constant 0 : index
    %c0_48 = arith.constant 0 : index
    %c0_49 = arith.constant 0 : index
    %78 = vector.load %arg9[%c0_47, %c0_48, %c0_49] : memref<1x8x1xf32, #tpu.memory_space<vmem>>, vector<1x8x1xf32>
    %79 = vector.shape_cast %78 : vector<1x8x1xf32> to vector<8x1xf32>
    %80 = vector.shape_cast %77 : vector<8x1xf32> to vector<1x8x1xf32>
    tpu.vector_store %arg9[%c0_47, %c0_48, %c0_49], %80 {strides = array<i32>} : memref<1x8x1xf32, #tpu.memory_space<vmem>>, vector<1x8x1xf32>,
    %81 = arith.mulf %72, %72 : vector<8x256xf32>
    %cst_50 = arith.constant dense<0.000000e+00> : vector<8xf32>
    %82 = vector.multi_reduction <add>, %81, %cst_50 [1] : vector<8x256xf32> to vector<8xf32>
    %83 = vector.shape_cast %82 : vector<8xf32> to vector<8x1xf32>
    %c0_51 = arith.constant 0 : index
    %c0_52 = arith.constant 0 : index
    %c0_53 = arith.constant 0 : index
    %84 = vector.load %arg10[%c0_51, %c0_52, %c0_53] : memref<1x8x1xf32, #tpu.memory_space<vmem>>, vector<1x8x1xf32>
    %85 = vector.shape_cast %84 : vector<1x8x1xf32> to vector<8x1xf32>
    %86 = vector.shape_cast %83 : vector<8x1xf32> to vector<1x8x1xf32>
    tpu.vector_store %arg10[%c0_51, %c0_52, %c0_53], %86 {strides = array<i32>} : memref<1x8x1xf32, #tpu.memory_space<vmem>>, vector<1x8x1xf32>,
    return
  }
  func.func @transform_0(%arg0: i32) -> (i32, i32, i32) {
    %c0_i32 = arith.constant 0 : i32
    %c0_i32_0 = arith.constant 0 : i32
    %c0_i32_1 = arith.constant 0 : i32
    return %arg0, %c0_i32, %c0_i32_0 : i32, i32, i32
  }
  func.func @transform_1(%arg0: i32) -> (i32, i32, i32) {
    %c0_i32 = arith.constant 0 : i32
    %c0_i32_0 = arith.constant 0 : i32
    %c0_i32_1 = arith.constant 0 : i32
    %c0_i32_2 = arith.constant 0 : i32
    return %c0_i32, %c0_i32_0, %c0_i32_1 : i32, i32, i32
  }
  func.func @transform_2(%arg0: i32) -> (i32, i32, i32) {
    %c0_i32 = arith.constant 0 : i32
    %c0_i32_0 = arith.constant 0 : i32
    %c0_i32_1 = arith.constant 0 : i32
    %c0_i32_2 = arith.constant 0 : i32
    return %c0_i32, %c0_i32_0, %c0_i32_1 : i32, i32, i32
  }
  func.func @transform_3(%arg0: i32) -> (i32, i32) {
    %c0_i32 = arith.constant 0 : i32
    %c0_i32_0 = arith.constant 0 : i32
    %c0_i32_1 = arith.constant 0 : i32
    return %c0_i32, %c0_i32_0 : i32, i32
  }
  func.func @transform_4(%arg0: i32) -> (i32, i32) {
    %c0_i32 = arith.constant 0 : i32
    %c0_i32_0 = arith.constant 0 : i32
    %c0_i32_1 = arith.constant 0 : i32
    return %c0_i32, %c0_i32_0 : i32, i32
  }
  func.func @transform_5(%arg0: i32) -> (i32, i32) {
    %c0_i32 = arith.constant 0 : i32
    %c0_i32_0 = arith.constant 0 : i32
    %c0_i32_1 = arith.constant 0 : i32
    return %c0_i32, %c0_i32_0 : i32, i32
  }
  func.func @transform_6(%arg0: i32) -> (i32, i32) {
    %c0_i32 = arith.constant 0 : i32
    %c0_i32_0 = arith.constant 0 : i32
    %c0_i32_1 = arith.constant 0 : i32
    return %c0_i32, %c0_i32_0 : i32, i32
  }
  func.func @transform_7(%arg0: i32) -> (i32, i32, i32) {
    %c0_i32 = arith.constant 0 : i32
    %c0_i32_0 = arith.constant 0 : i32
    %c0_i32_1 = arith.constant 0 : i32
    return %arg0, %c0_i32, %c0_i32_0 : i32, i32, i32
  }
  func.func @transform_8(%arg0: i32) -> (i32, i32, i32) {
    %c0_i32 = arith.constant 0 : i32
    %c0_i32_0 = arith.constant 0 : i32
    %c0_i32_1 = arith.constant 0 : i32
    return %arg0, %c0_i32, %c0_i32_0 : i32, i32, i32
  }
  func.func @transform_9(%arg0: i32) -> (i32, i32, i32) {
    %c0_i32 = arith.constant 0 : i32
    %c0_i32_0 = arith.constant 0 : i32
    %c0_i32_1 = arith.constant 0 : i32
    return %arg0, %c0_i32, %c0_i32_0 : i32, i32, i32
  }
}

module attributes {stable_mosaic.version = 11 : i64} {
  func.func @conv1x1_kernel(%arg0: i32, %arg1: i32, %arg2: memref<1x8x256xf32, #tpu.memory_space<vmem>>, %arg3: memref<2x8x1xf32, #tpu.memory_space<vmem>>, %arg4: memref<2x8x1xf32, #tpu.memory_space<vmem>>, %arg5: memref<8x1xf32, #tpu.memory_space<vmem>>, %arg6: memref<8x1xf32, #tpu.memory_space<vmem>>, %arg7: memref<3x8xbf16, #tpu.memory_space<vmem>>, %arg8: memref<3x1xf32, #tpu.memory_space<vmem>>, %arg9: memref<1x3x256xf32, #tpu.memory_space<vmem>>) attributes {dimension_semantics = [#tpu.dimension_semantics<parallel>, #tpu.dimension_semantics<parallel>], iteration_bounds = array<i64: 2, 1>, scalar_prefetch = 0 : i64, scratch_operands = 0 : i64, tpu.core_type = #tpu.core_type<tc>, window_params = [{transform_indices = @transform_0, window_bounds = array<i64: 1, 8, 256>}, {pipeline_mode = #tpu.pipeline_mode<synchronous>, transform_indices = @transform_1, window_bounds = array<i64: 2, 8, 1>}, {pipeline_mode = #tpu.pipeline_mode<synchronous>, transform_indices = @transform_2, window_bounds = array<i64: 2, 8, 1>}, {pipeline_mode = #tpu.pipeline_mode<synchronous>, transform_indices = @transform_3, window_bounds = array<i64: 8, 1>}, {pipeline_mode = #tpu.pipeline_mode<synchronous>, transform_indices = @transform_4, window_bounds = array<i64: 8, 1>}, {pipeline_mode = #tpu.pipeline_mode<synchronous>, transform_indices = @transform_5, window_bounds = array<i64: 3, 8>}, {pipeline_mode = #tpu.pipeline_mode<synchronous>, transform_indices = @transform_6, window_bounds = array<i64: 3, 1>}, {transform_indices = @transform_7, window_bounds = array<i64: 1, 3, 256>}]} {
    %c0 = arith.constant 0 : index
    %c0_0 = arith.constant 0 : index
    %c0_1 = arith.constant 0 : index
    %0 = vector.load %arg2[%c0, %c0_0, %c0_1] : memref<1x8x256xf32, #tpu.memory_space<vmem>>, vector<1x8x256xf32>
    %1 = vector.shape_cast %0 : vector<1x8x256xf32> to vector<8x256xf32>
    %c0_2 = arith.constant 0 : index
    %c0_3 = arith.constant 0 : index
    %c0_4 = arith.constant 0 : index
    %2 = vector.load %arg3[%c0_2, %c0_3, %c0_4] : memref<2x8x1xf32, #tpu.memory_space<vmem>>, vector<2x8x1xf32>
    %c0_5 = arith.constant 0 : index
    %c0_6 = arith.constant 0 : index
    %c0_7 = arith.constant 0 : index
    %3 = vector.load %arg4[%c0_5, %c0_6, %c0_7] : memref<2x8x1xf32, #tpu.memory_space<vmem>>, vector<2x8x1xf32>
    %c0_8 = arith.constant 0 : index
    %c0_9 = arith.constant 0 : index
    %4 = vector.load %arg5[%c0_8, %c0_9] : memref<8x1xf32, #tpu.memory_space<vmem>>, vector<8x1xf32>
    %c0_10 = arith.constant 0 : index
    %c0_11 = arith.constant 0 : index
    %5 = vector.load %arg6[%c0_10, %c0_11] : memref<8x1xf32, #tpu.memory_space<vmem>>, vector<8x1xf32>
    %cst = arith.constant dense<0.000000e+00> : vector<8x1xf32>
    %6 = vector.multi_reduction <add>, %2, %cst [0] : vector<2x8x1xf32> to vector<8x1xf32>
    %cst_12 = arith.constant dense<0.000000e+00> : vector<8x1xf32>
    %7 = vector.multi_reduction <add>, %3, %cst_12 [0] : vector<2x8x1xf32> to vector<8x1xf32>
    %cst_13 = arith.constant 0.001953125 : f32
    %8 = vector.broadcast %cst_13 : f32 to vector<8x1xf32>
    %9 = arith.mulf %6, %8 : vector<8x1xf32>
    %cst_14 = arith.constant 0.001953125 : f32
    %10 = vector.broadcast %cst_14 : f32 to vector<8x1xf32>
    %11 = arith.mulf %7, %10 : vector<8x1xf32>
    %12 = arith.mulf %9, %9 : vector<8x1xf32>
    %13 = arith.subf %11, %12 : vector<8x1xf32>
    %cst_15 = arith.constant 0.000000e+00 : f32
    %14 = vector.broadcast %cst_15 : f32 to vector<8x1xf32>
    %15 = arith.maximumf %13, %14 : vector<8x1xf32>
    %cst_16 = arith.constant 9.99999974E-6 : f32
    %16 = vector.broadcast %cst_16 : f32 to vector<8x1xf32>
    %17 = arith.addf %15, %16 : vector<8x1xf32>
    %18 = math.rsqrt %17 : vector<8x1xf32>
    %19 = arith.mulf %4, %18 : vector<8x1xf32>
    %20 = arith.mulf %9, %19 : vector<8x1xf32>
    %21 = arith.subf %5, %20 : vector<8x1xf32>
    %22 = vector.broadcast %19 : vector<8x1xf32> to vector<8x256xf32>
    %23 = arith.mulf %1, %22 : vector<8x256xf32>
    %24 = vector.broadcast %21 : vector<8x1xf32> to vector<8x256xf32>
    %25 = arith.addf %23, %24 : vector<8x256xf32>
    %cst_17 = arith.constant 0.000000e+00 : f32
    %26 = vector.broadcast %cst_17 : f32 to vector<8x256xf32>
    %27 = arith.maximumf %25, %26 : vector<8x256xf32>
    %c0_18 = arith.constant 0 : index
    %c0_19 = arith.constant 0 : index
    %28 = vector.load %arg7[%c0_18, %c0_19] : memref<3x8xbf16, #tpu.memory_space<vmem>>, vector<3x8xbf16>
    %29 = arith.truncf %27 : vector<8x256xf32> to vector<8x256xbf16>
    %cst_20 = arith.constant dense<0.000000e+00> : vector<3x256xf32>
    %30 = tpu.matmul %28, %29, %cst_20 {dimension_numbers = #tpu.dot_dimension_numbers<[1], [0], [0], [1], [0, 0, 1, 1], [], []>} : vector<3x8xbf16>, vector<8x256xbf16>, vector<3x256xf32> -> vector<3x256xf32>
    %c0_21 = arith.constant 0 : index
    %c0_22 = arith.constant 0 : index
    %31 = vector.load %arg8[%c0_21, %c0_22] : memref<3x1xf32, #tpu.memory_space<vmem>>, vector<3x1xf32>
    %32 = vector.broadcast %31 : vector<3x1xf32> to vector<3x256xf32>
    %33 = arith.addf %30, %32 : vector<3x256xf32>
    %c0_23 = arith.constant 0 : index
    %c0_24 = arith.constant 0 : index
    %c0_25 = arith.constant 0 : index
    %34 = vector.load %arg9[%c0_23, %c0_24, %c0_25] : memref<1x3x256xf32, #tpu.memory_space<vmem>>, vector<1x3x256xf32>
    %35 = vector.shape_cast %34 : vector<1x3x256xf32> to vector<3x256xf32>
    %36 = vector.shape_cast %33 : vector<3x256xf32> to vector<1x3x256xf32>
    tpu.vector_store %arg9[%c0_23, %c0_24, %c0_25], %36 {strides = array<i32>} : memref<1x3x256xf32, #tpu.memory_space<vmem>>, vector<1x3x256xf32>,
    return
  }
  func.func @transform_0(%arg0: i32, %arg1: i32) -> (i32, i32, i32) {
    %c0_i32 = arith.constant 0 : i32
    %c0_i32_0 = arith.constant 0 : i32
    return %arg0, %c0_i32, %arg1 : i32, i32, i32
  }
  func.func @transform_1(%arg0: i32, %arg1: i32) -> (i32, i32, i32) {
    %c0_i32 = arith.constant 0 : i32
    %c0_i32_0 = arith.constant 0 : i32
    %c0_i32_1 = arith.constant 0 : i32
    %c0_i32_2 = arith.constant 0 : i32
    return %c0_i32, %c0_i32_0, %c0_i32_1 : i32, i32, i32
  }
  func.func @transform_2(%arg0: i32, %arg1: i32) -> (i32, i32, i32) {
    %c0_i32 = arith.constant 0 : i32
    %c0_i32_0 = arith.constant 0 : i32
    %c0_i32_1 = arith.constant 0 : i32
    %c0_i32_2 = arith.constant 0 : i32
    return %c0_i32, %c0_i32_0, %c0_i32_1 : i32, i32, i32
  }
  func.func @transform_3(%arg0: i32, %arg1: i32) -> (i32, i32) {
    %c0_i32 = arith.constant 0 : i32
    %c0_i32_0 = arith.constant 0 : i32
    %c0_i32_1 = arith.constant 0 : i32
    return %c0_i32, %c0_i32_0 : i32, i32
  }
  func.func @transform_4(%arg0: i32, %arg1: i32) -> (i32, i32) {
    %c0_i32 = arith.constant 0 : i32
    %c0_i32_0 = arith.constant 0 : i32
    %c0_i32_1 = arith.constant 0 : i32
    return %c0_i32, %c0_i32_0 : i32, i32
  }
  func.func @transform_5(%arg0: i32, %arg1: i32) -> (i32, i32) {
    %c0_i32 = arith.constant 0 : i32
    %c0_i32_0 = arith.constant 0 : i32
    %c0_i32_1 = arith.constant 0 : i32
    return %c0_i32, %c0_i32_0 : i32, i32
  }
  func.func @transform_6(%arg0: i32, %arg1: i32) -> (i32, i32) {
    %c0_i32 = arith.constant 0 : i32
    %c0_i32_0 = arith.constant 0 : i32
    %c0_i32_1 = arith.constant 0 : i32
    return %c0_i32, %c0_i32_0 : i32, i32
  }
  func.func @transform_7(%arg0: i32, %arg1: i32) -> (i32, i32, i32) {
    %c0_i32 = arith.constant 0 : i32
    %c0_i32_0 = arith.constant 0 : i32
    return %arg0, %c0_i32, %arg1 : i32, i32, i32
  }
}

</mosaic_0001>

<llo_original>
// kernel: scale_output_forward.5
$region0: #{scale_output_forward.5}
  #allocation0 [shape = 'u32[]', space=smem, size = 0x4, offset = 0x4, fixed_abs, tag = 'smem constant byte address 0x4 - core index']
  #allocation1 [shape = 'u32[144,128]{1,0:T(1,128)}', space=vmem, size = 0x12000, scoped, tag = 'internal scratch']
  %s0 = inlined_call_operand.vmem [shape: f32[2,8,256], index: 0, kind: input, shape index: {}]
  %s1 = inlined_call_operand.vmem [shape: f32[2,8,1], index: 1, kind: input, shape index: {}]
  %s2 = inlined_call_operand.vmem [shape: f32[2,8,1], index: 2, kind: input, shape index: {}]
  %s3 = inlined_call_operand.vmem [shape: f32[8,1], index: 3, kind: input, shape index: {}]
  %s4 = inlined_call_operand.vmem [shape: f32[8,1], index: 4, kind: input, shape index: {}]
  %s5 = inlined_call_operand.vmem [shape: bf16[3,8], index: 5, kind: input, shape index: {}]
  %s6 = inlined_call_operand.vmem [shape: f32[3,1], index: 6, kind: input, shape index: {}]
  %s7 = inlined_call_operand.vmem [shape: f32[2,3,256], index: 7, kind: output, shape index: {}]
  %s8 = sld [smem:[#allocation0]]
  $region61: #{scale_output_forward.5} parent=0
    _
  %s10 = ssub.s32 1, %s8
  %s11 = scalar_select 0, %s10, %s8
  loop: start=0, step=1, limit=4
  $region2: #{scale_output_forward.5} parent=0 // loop_pre_header
    _
  $region3: #{scale_output_forward.5} parent=0 // loop_header
    %s13 = sphi 0, %s17
    %p14 = scmp.ge.s32.totalorder %s13, 4
    %s20 = sphi 0, %s32
    %s21 = sphi 0, %s28
    %s22 = sphi 0, %s20
    %s23 = sphi 0, %s21
    %s24 = sphi 0, %s22
    %s25 = sphi 0, %s23
    %s37 = sphi 0, %s39
    %s40 = sphi 0, %s37
    %s41 = sphi 0, %s40
    %s57 = sphi 0, %s41
    %s61 = sphi 0, %s61
    %s63 = sphi 0, %s61
    %s64 = sphi 0, %s63
    %s78 = sphi 0, %s64
    %s82 = sphi 0, %s82
    %s84 = sphi 0, %s82
    %s85 = sphi 0, %s84
    %s99 = sphi 0, %s85
    %s103 = sphi 0, %s103
    %s105 = sphi 0, %s103
    %s106 = sphi 0, %s105
    %s120 = sphi 0, %s106
    %s124 = sphi 0, %s124
    %s126 = sphi 0, %s124
    %s127 = sphi 0, %s126
    %s141 = sphi 0, %s127
    %s145 = sphi 0, %s145
    %s147 = sphi 0, %s145
    %s148 = sphi 0, %s147
    %s162 = sphi 0, %s148
    %s166 = sphi 0, %s166
    %s168 = sphi 0, %s166
    %s169 = sphi 0, %s168
    %s183 = sphi 0, %s169
    %s191 = sphi 0, %s193
    %s194 = sphi 0, %s191
    %s195 = sphi 0, %s194
    %s211 = sphi 0, %s195
  $region4: #{scale_output_forward.5} parent=0 // loop_header_branch
    %16 = sbr.rel (%p14) target = $region8
  $region5: #{scale_output_forward.5} parent=0 // loop_body
    %s18 = ssub.s32 %s13, 1
    %s19 = ssub.s32 %s13, 2
    %s26 = sadd.s32 1, %s21
    %p27 = scmp.ge.s32.totalorder %s26, 1
    %s28 = scalar_select %p27, 0, %s26
    %s29 = sadd.s32 1, %s20
    %s30 = scalar_select %p27, %s29, %s20
    %p31 = scmp.ge.s32.totalorder %s30, 2
    %s32 = scalar_select %p31, 0, %s30
    %s33 = ssub.s32 %s20, %s32
    %s34 = ssub.s32 %s21, %s28
    %s35 = sor.u32 %s33, %s34
    %p36 = scmp.eq.s32.totalorder %s35, 0
    %s38 = sadd.s32 %s37, 1
    %s39 = scalar_select %p36, %s37, %s38
    %p42 = pneg %p36
    %p43 = scmp.eq.s32.totalorder %s13, 1
    %p44 = por %p42, %p43
    %p45 = scmp.ne.s32.totalorder %s37, %s40
    %p46 = scmp.eq.s32.totalorder %s13, 0
    %p47 = por %p45, %p46
    %p48 = scmp.ne.s32.totalorder %s37, %s40
    %p49 = scmp.eq.s32.totalorder %s18, 1
    %p50 = por %p48, %p49
    %p51 = scmp.ne.s32.totalorder %s40, %s41
    %p52 = scmp.eq.s32.totalorder %s18, 0
    %p53 = por %p51, %p52
    %p54 = scmp.ne.s32.totalorder %s40, %s41
    %p55 = scmp.eq.s32.totalorder %s19, 1
    %p56 = por %p54, %p55
    %p58 = scmp.ne.s32.totalorder %s41, %s57
    %p59 = scmp.eq.s32.totalorder %s19, 0
    %p60 = por %p58, %p59
    %s62 = sadd.s32 %s61, 1
    %p65 = scmp.eq.s32.totalorder %s13, 1
    %p66 = scmp.ne.s32.totalorder %s61, %s63
    %p67 = scmp.eq.s32.totalorder %s13, 0
    %p68 = por %p66, %p67
    %p69 = scmp.ne.s32.totalorder %s61, %s63
    %p70 = scmp.eq.s32.totalorder %s18, 1
    %p71 = por %p69, %p70
    %p72 = scmp.ne.s32.totalorder %s63, %s64
    %p73 = scmp.eq.s32.totalorder %s18, 0
    %p74 = por %p72, %p73
    %p75 = scmp.ne.s32.totalorder %s63, %s64
    %p76 = scmp.eq.s32.totalorder %s19, 1
    %p77 = por %p75, %p76
    %p79 = scmp.ne.s32.totalorder %s64, %s78
    %p80 = scmp.eq.s32.totalorder %s19, 0
    %p81 = por %p79, %p80
    %s83 = sadd.s32 %s82, 1
    %p86 = scmp.eq.s32.totalorder %s13, 1
    %p87 = scmp.ne.s32.totalorder %s82, %s84
    %p88 = scmp.eq.s32.totalorder %s13, 0
    %p89 = por %p87, %p88
    %p90 = scmp.ne.s32.totalorder %s82, %s84
    %p91 = scmp.eq.s32.totalorder %s18, 1
    %p92 = por %p90, %p91
    %p93 = scmp.ne.s32.totalorder %s84, %s85
    %p94 = scmp.eq.s32.totalorder %s18, 0
    %p95 = por %p93, %p94
    %p96 = scmp.ne.s32.totalorder %s84, %s85
    %p97 = scmp.eq.s32.totalorder %s19, 1
    %p98 = por %p96, %p97
    %p100 = scmp.ne.s32.totalorder %s85, %s99
    %p101 = scmp.eq.s32.totalorder %s19, 0
    %p102 = por %p100, %p101
    %s104 = sadd.s32 %s103, 1
    %p107 = scmp.eq.s32.totalorder %s13, 1
    %p108 = scmp.ne.s32.totalorder %s103, %s105
    %p109 = scmp.eq.s32.totalorder %s13, 0
    %p110 = por %p108, %p109
    %p111 = scmp.ne.s32.totalorder %s103, %s105
    %p112 = scmp.eq.s32.totalorder %s18, 1
    %p113 = por %p111, %p112
    %p114 = scmp.ne.s32.totalorder %s105, %s106
    %p115 = scmp.eq.s32.totalorder %s18, 0
    %p116 = por %p114, %p115
    %p117 = scmp.ne.s32.totalorder %s105, %s106
    %p118 = scmp.eq.s32.totalorder %s19, 1
    %p119 = por %p117, %p118
    %p121 = scmp.ne.s32.totalorder %s106, %s120
    %p122 = scmp.eq.s32.totalorder %s19, 0
    %p123 = por %p121, %p122
    %s125 = sadd.s32 %s124, 1
    %p128 = scmp.eq.s32.totalorder %s13, 1
    %p129 = scmp.ne.s32.totalorder %s124, %s126
    %p130 = scmp.eq.s32.totalorder %s13, 0
    %p131 = por %p129, %p130
    %p132 = scmp.ne.s32.totalorder %s124, %s126
    %p133 = scmp.eq.s32.totalorder %s18, 1
    %p134 = por %p132, %p133
    %p135 = scmp.ne.s32.totalorder %s126, %s127
    %p136 = scmp.eq.s32.totalorder %s18, 0
    %p137 = por %p135, %p136
    %p138 = scmp.ne.s32.totalorder %s126, %s127
    %p139 = scmp.eq.s32.totalorder %s19, 1
    %p140 = por %p138, %p139
    %p142 = scmp.ne.s32.totalorder %s127, %s141
    %p143 = scmp.eq.s32.totalorder %s19, 0
    %p144 = por %p142, %p143
    %s146 = sadd.s32 %s145, 1
    %p149 = scmp.eq.s32.totalorder %s13, 1
    %p150 = scmp.ne.s32.totalorder %s145, %s147
    %p151 = scmp.eq.s32.totalorder %s13, 0
    %p152 = por %p150, %p151
    %p153 = scmp.ne.s32.totalorder %s145, %s147
    %p154 = scmp.eq.s32.totalorder %s18, 1
    %p155 = por %p153, %p154
    %p156 = scmp.ne.s32.totalorder %s147, %s148
    %p157 = scmp.eq.s32.totalorder %s18, 0
    %p158 = por %p156, %p157
    %p159 = scmp.ne.s32.totalorder %s147, %s148
    %p160 = scmp.eq.s32.totalorder %s19, 1
    %p161 = por %p159, %p160
    %p163 = scmp.ne.s32.totalorder %s148, %s162
    %p164 = scmp.eq.s32.totalorder %s19, 0
    %p165 = por %p163, %p164
    %s167 = sadd.s32 %s166, 1
    %p170 = scmp.eq.s32.totalorder %s13, 1
    %p171 = scmp.ne.s32.totalorder %s166, %s168
    %p172 = scmp.eq.s32.totalorder %s13, 0
    %p173 = por %p171, %p172
    %p174 = scmp.ne.s32.totalorder %s166, %s168
    %p175 = scmp.eq.s32.totalorder %s18, 1
    %p176 = por %p174, %p175
    %p177 = scmp.ne.s32.totalorder %s168, %s169
    %p178 = scmp.eq.s32.totalorder %s18, 0
    %p179 = por %p177, %p178
    %p180 = scmp.ne.s32.totalorder %s168, %s169
    %p181 = scmp.eq.s32.totalorder %s19, 1
    %p182 = por %p180, %p181
    %p184 = scmp.ne.s32.totalorder %s169, %s183
    %p185 = scmp.eq.s32.totalorder %s19, 0
    %p186 = por %p184, %p185
    %s187 = ssub.s32 %s20, %s32
    %s188 = ssub.s32 %s21, %s28
    %s189 = sor.u32 %s187, %s188
    %p190 = scmp.eq.s32.totalorder %s189, 0
    %s192 = sadd.s32 %s191, 1
    %s193 = scalar_select %p190, %s191, %s192
    %p196 = pneg %p190
    %p197 = scmp.eq.s32.totalorder %s13, 1
    %p198 = por %p196, %p197
    %p199 = scmp.ne.s32.totalorder %s191, %s194
    %p200 = scmp.eq.s32.totalorder %s13, 0
    %p201 = por %p199, %p200
    %p202 = scmp.ne.s32.totalorder %s191, %s194
    %p203 = scmp.eq.s32.totalorder %s18, 1
    %p204 = por %p202, %p203
    %p205 = scmp.ne.s32.totalorder %s194, %s195
    %p206 = scmp.eq.s32.totalorder %s18, 0
    %p207 = por %p205, %p206
    %p208 = scmp.ne.s32.totalorder %s194, %s195
    %p209 = scmp.eq.s32.totalorder %s19, 1
    %p210 = por %p208, %p209
    %p212 = scmp.ne.s32.totalorder %s195, %s211
    %p213 = scmp.eq.s32.totalorder %s19, 0
    %p214 = por %p212, %p213
    %p215 = scmp.le.s32.totalorder 1, %s13
    %p216 = scmp.lt.s32.totalorder %s13, 3
    %p217 = pnand %p215, %p216
    %p218 = pneg %p217
    // Predicated region
    $region9: #{scale_output_forward.5} parent=5 // pred_check
      _
    $region10: #{scale_output_forward.5} parent=5 // pred_check_branch
      %220 = sbr.rel (%p217) target = $region12
    $region11: #{scale_output_forward.5} parent=5 // pred_region
      %s221 = ssub.s32 %s13, 1
      // Predicated region
      $region13: #{scale_output_forward.5} parent=11 // pred_check
        %p222 = pneg %p74
      $region14: #{scale_output_forward.5} parent=11 // pred_check_branch
        %224 = sbr.rel (%p222) target = $region16
      $region15: #{scale_output_forward.5} parent=11 // pred_region
        _
      $region16: #{scale_output_forward.5} parent=11 // pred_fallthru
        _
      // Predicated region
      $region17: #{scale_output_forward.5} parent=11 // pred_check
        %p225 = pneg %p95
      $region18: #{scale_output_forward.5} parent=11 // pred_check_branch
        %227 = sbr.rel (%p225) target = $region20
      $region19: #{scale_output_forward.5} parent=11 // pred_region
        _
      $region20: #{scale_output_forward.5} parent=11 // pred_fallthru
        _
      // Predicated region
      $region21: #{scale_output_forward.5} parent=11 // pred_check
        %p228 = pneg %p116
      $region22: #{scale_output_forward.5} parent=11 // pred_check_branch
        %230 = sbr.rel (%p228) target = $region24
      $region23: #{scale_output_forward.5} parent=11 // pred_region
        _
      $region24: #{scale_output_forward.5} parent=11 // pred_fallthru
        _
      // Predicated region
      $region25: #{scale_output_forward.5} parent=11 // pred_check
        %p231 = pneg %p137
      $region26: #{scale_output_forward.5} parent=11 // pred_check_branch
        %233 = sbr.rel (%p231) target = $region28
      $region27: #{scale_output_forward.5} parent=11 // pred_region
        _
      $region28: #{scale_output_forward.5} parent=11 // pred_fallthru
        _
      // Predicated region
      $region29: #{scale_output_forward.5} parent=11 // pred_check
        %p234 = pneg %p158
      $region30: #{scale_output_forward.5} parent=11 // pred_check_branch
        %236 = sbr.rel (%p234) target = $region32
      $region31: #{scale_output_forward.5} parent=11 // pred_region
        _
      $region32: #{scale_output_forward.5} parent=11 // pred_fallthru
        _
      // Predicated region
      $region33: #{scale_output_forward.5} parent=11 // pred_check
        %p237 = pneg %p179
      $region34: #{scale_output_forward.5} parent=11 // pred_check_branch
        %239 = sbr.rel (%p237) target = $region36
      $region35: #{scale_output_forward.5} parent=11 // pred_region
        _
      $region36: #{scale_output_forward.5} parent=11 // pred_fallthru
        _
    $region12: #{scale_output_forward.5} parent=5 // pred_fallthru
      _
    %p240 = scmp.lt.s32.totalorder %s13, 2
    // Predicated region
    $region37: #{scale_output_forward.5} parent=5 // pred_check
      %p241 = pneg %p240
    $region38: #{scale_output_forward.5} parent=5 // pred_check_branch
      %243 = sbr.rel (%p241) target = $region40
    $region39: #{scale_output_forward.5} parent=5 // pred_region
      // Predicated region
      $region41: #{scale_output_forward.5} parent=39 // pred_check
        %p244 = pneg %p47
      $region42: #{scale_output_forward.5} parent=39 // pred_check_branch
        %246 = sbr.rel (%p244) target = $region44
      $region43: #{scale_output_forward.5} parent=39 // pred_region
        %s247 = smul.u32 2, %s21
        %p248 = scmp.lt.s32.totalorder %s20, 1
        %s249 = scalar_select %p248, %s20, 1
        %p250 = scmp.lt.s32.totalorder %s247, 1
        %s251 = scalar_select %p250, %s247, 1
        %s252 = smul.addr %s249, 2
        %s253 = sadd.s32 %s251, %s252
        %s254 = smul.addr %s253, 8
        %s255 = scalar_lea.vmem %s0, %s254
        %s256 = smul.u32 2, %s21
      $region44: #{scale_output_forward.5} parent=39 // pred_fallthru
        _
    $region40: #{scale_output_forward.5} parent=5 // pred_fallthru
      _
    %p257 = scmp.le.s32.totalorder 1, %s13
    %p258 = scmp.lt.s32.totalorder %s13, 3
    %p259 = pnand %p257, %p258
    %p260 = pneg %p259
    // Predicated region
    $region45: #{scale_output_forward.5} parent=5 // pred_check
      _
    $region46: #{scale_output_forward.5} parent=5 // pred_check_branch
      %262 = sbr.rel (%p259) target = $region48
    $region47: #{scale_output_forward.5} parent=5 // pred_region
      %s263 = ssub.s32 %s13, 1
      %s264 = smul.u32 2, %s23
      %p265 = scmp.lt.s32.totalorder %s22, 1
      %s266 = scalar_select %p265, %s22, 1
      %p267 = scmp.lt.s32.totalorder %s264, 1
      %s268 = scalar_select %p267, %s264, 1
      %s269 = smul.addr %s266, 2
      %s270 = sadd.s32 %s268, %s269
      %s271 = smul.addr %s270, 8
      %s272 = scalar_lea.vmem %s0, %s271
      %p273 = pneg %p53
      %p274 = pneg %p50
      %p275 = pneg %p74
      %p276 = pneg %p71
      %p277 = pneg %p95
      %p278 = pneg %p92
      %p279 = pneg %p116
      %p280 = pneg %p113
      %p281 = pneg %p137
      %p282 = pneg %p134
      %p283 = pneg %p158
      %p284 = pneg %p155
      %p285 = pneg %p179
      %p286 = pneg %p176
      %p287 = pneg %p207
      %p288 = pneg %p204
      %s289 = smul.u32 2, %s23
      %p290 = scmp.lt.s32.totalorder %s22, 1
      %s291 = scalar_select %p290, %s22, 1
      %p292 = scmp.lt.s32.totalorder %s289, 1
      %s293 = scalar_select %p292, %s289, 1
      %s294 = smul.addr %s291, 2
      %s295 = sadd.s32 %s293, %s294
      %s296 = smul.addr %s295, 4
      %s297 = scalar_lea.vmem %s7, %s296
      %s298 = smul.u32 2, %s23
      %p299 = scmp.lt.s32.totalorder %s22, 1
      %s300 = scalar_select %p299, %s22, 1
      %p301 = scmp.lt.s32.totalorder %s298, 1
      %s302 = scalar_select %p301, %s298, 1
      %s303 = smul.addr %s300, 2
      %s304 = sadd.s32 %s302, %s303
      %s305 = smul.addr %s304, 8
      %s306 = scalar_lea.vmem %s0, %s305
      %s307 = smul.u32 2, %s23
      %s308 = smul.u32 2, %s23
      %p309 = scmp.lt.s32.totalorder %s22, 1
      %s310 = scalar_select %p309, %s22, 1
      %p311 = scmp.lt.s32.totalorder %s308, 1
      %s312 = scalar_select %p311, %s308, 1
      %s313 = smul.addr %s310, 2
      %s314 = sadd.s32 %s312, %s313
      %s315 = smul.addr %s314, 4
      %s316 = scalar_lea.vmem %s7, %s315
      %s317 = smul.u32 2, %s23
      %v319 = vld [vmem:[%s306] sm:$0xff]
      %v320 = vld [vmem:[%s306 + $0x8] sm:$0xff]
      %v321 = vld [vmem:[%s1] sm:$0xff]
      %v322 = vld [vmem:[%s1 + $0x8] sm:$0xff]
      %v323 = vld [vmem:[%s2] sm:$0xff]
      %v324 = vld [vmem:[%s2 + $0x8] sm:$0xff]
      %v325 = vld [vmem:[%s3] sm:$0xff]
      %v326 = vld [vmem:[%s4] sm:$0xff]
      %vm327 = vcmask 7168
      %v328 = vsel %vm327, %v321, 0.0
      %v329 = vsel %vm327, %v322, 0.0
      %v330 = vadd.f32 %v328, %v329
      %v331 = vsel %vm327, %v323, 0.0
      %v332 = vsel %vm327, %v324, 0.0
      %v333 = vadd.f32 %v331, %v332
      %v334 = vmul.f32 %v330, 0.001953125
      %v335 = vmul.f32 %v333, 0.001953125
      %v336 = vmul.f32 %v334, %v334
      %v337 = vsub.f32 %v335, %v336
      %v338 = vmax.f32 %v337, 0.0
      %v339 = vadd.f32 %v338, 1e-05
      %v340 = vrsqrt.pop %v339
      %v341 = vmul.f32 %v325, %v340
      %v342 = vmul.f32 %v334, %v341
      %v343 = vsub.f32 %v326, %v342
      %345 = vset.pattern.permute.xlu0 0
      %346 = vperm.xlu0 %345, %v341
      %v347 = vpop.permute.xlu0 %346
      %v349 = vmul.f32 %v319, %v347
      %v350 = vmul.f32 %v320, %v347
      %352 = vset.pattern.permute.xlu0 0
      %353 = vperm.xlu0 %352, %v343
      %v354 = vpop.permute.xlu0 %353
      %v356 = vadd.f32 %v349, %v354
      %v357 = vadd.f32 %v350, %v354
      %v358 = vmax.f32 %v356, 0.0
      %v359 = vmax.f32 %v357, 0.0
      %v360 = vld [vmem:[%s5] sm:$0x3]
      %v361 = vpack.c.bf16 %v358, %v358
      %v362 = vpack.c.bf16 %v359, %v359
      %v363 = vld [vmem:[%s6] sm:$0x7]
      %365 = vset.pattern.permute.xlu0 0
      %366 = vperm.xlu0 %365, %v363
      %v367 = vpop.permute.xlu0 %366
      %vm369 = vcmask 64512
      %v371 = vsel %vm369, %v360, 0
      %vm373 = vcmask 1043456
      %v375 = vsel %vm373, %v361, 0
      %v378 = vsel %vm373, %v362, 0
      %380 = vmatprep.subr.bf16.mxu0 0
      %381 = vmatpush1.bf16.msra.mxu0 0
      %382 = vmatprep.subr.bf16.mxu0 0
      %383 = vmatpush1.bf16.msra.mxu0 0
      %384 = vmatprep.subr.bf16.mxu0 0
      %385 = vmatpush1.bf16.msra.mxu0 0
      %386 = vmatprep.subr.bf16.mxu0 0
      %387 = vmatpush1.bf16.msra.mxu0 0
      %388 = vmatprep.subr.bf16.mxu0 0
      %389 = vmatpush1.bf16.msra.mxu0 0
      %390 = vmatprep.subr.bf16.mxu0 0
      %391 = vmatpush1.bf16.msra.mxu0 0
      %392 = vmatprep.subr.bf16.mxu0 0
      %393 = vmatpush1.bf16.msra.mxu0 0
      %394 = vmatprep.subr.bf16.mxu0 %v378
      %395 = vmatpush1.bf16.msra.mxu0 %v375
      %396 = vmatprep.subr.bf16.mxu0 0
      %397 = vmatpush2.bf16.msra.mxu0 0
      %398 = vmatprep.subr.bf16.mxu0 0
      %399 = vmatpush2.bf16.msra.mxu0 0
      %400 = vmatprep.subr.bf16.mxu0 0
      %401 = vmatpush2.bf16.msra.mxu0 0
      %402 = vmatprep.subr.bf16.mxu0 0
      %403 = vmatpush2.bf16.msra.mxu0 0
      %404 = vmatprep.subr.bf16.mxu0 0
      %405 = vmatpush2.bf16.msra.mxu0 0
      %406 = vmatprep.subr.bf16.mxu0 0
      %407 = vmatpush2.bf16.msra.mxu0 0
      %408 = vmatprep.subr.bf16.mxu0 0
      %409 = vmatpush2.bf16.msra.mxu0 0
      %410 = vmatprep.subr.bf16.mxu0 0
      %411 = vmatpush2.bf16.msra.mxu0 0
      %412 = vmatprep.mubr.bf16.mxu0 0
      %413 = vmatmul.mubr.bf16.gmra.mxu0 %v371
      %v414 = vpop.f32.mrf.mxu0
      %v415 = vadd.f32 %v367, %v414
      %v416 = vpop.f32.mrf.mxu0
      %v417 = vadd.f32 %v367, %v416
      %v418 = vpop.f32.mrf.mxu0
      %v419 = vpop.f32.mrf.mxu0
      %420 = vdwg.mxu0
      %v423 = vcombine.low %v415, %v417
      %425 = vst [vmem:[%s316] sm:$0x77] %v423
      %s426 = smul.u32 2, %s23
      %p427 = scmp.lt.s32.totalorder %s22, 1
      %s428 = scalar_select %p427, %s22, 1
      %p429 = scmp.lt.s32.totalorder %s426, 1
      %s430 = scalar_select %p429, %s426, 1
      %s431 = smul.addr %s428, 2
      %s432 = sadd.s32 %s430, %s431
      %s433 = smul.addr %s432, 4
      %s434 = scalar_lea.vmem %s7, %s433
      // Predicated region
      $region49: #{scale_output_forward.5} parent=47 // pred_check
        %p435 = pneg %p204
      $region50: #{scale_output_forward.5} parent=47 // pred_check_branch
        %437 = sbr.rel (%p435) target = $region52
      $region51: #{scale_output_forward.5} parent=47 // pred_region
        %s438 = smul.u32 2, %s23
      $region52: #{scale_output_forward.5} parent=47 // pred_fallthru
        _
    $region48: #{scale_output_forward.5} parent=5 // pred_fallthru
      _
    %p439 = scmp.le.s32.totalorder 2, %s13
    // Predicated region
    $region53: #{scale_output_forward.5} parent=5 // pred_check
      %p440 = pneg %p439
    $region54: #{scale_output_forward.5} parent=5 // pred_check_branch
      %442 = sbr.rel (%p440) target = $region56
    $region55: #{scale_output_forward.5} parent=5 // pred_region
      %s443 = ssub.s32 %s13, 2
      // Predicated region
      $region57: #{scale_output_forward.5} parent=55 // pred_check
        %p444 = pneg %p210
      $region58: #{scale_output_forward.5} parent=55 // pred_check_branch
        %446 = sbr.rel (%p444) target = $region60
      $region59: #{scale_output_forward.5} parent=55 // pred_region
        %s447 = smul.u32 2, %s25
        %p448 = scmp.lt.s32.totalorder %s24, 1
        %s449 = scalar_select %p448, %s24, 1
        %p450 = scmp.lt.s32.totalorder %s447, 1
        %s451 = scalar_select %p450, %s447, 1
        %s452 = smul.addr %s449, 2
        %s453 = sadd.s32 %s451, %s452
        %s454 = smul.addr %s453, 4
        %s455 = scalar_lea.vmem %s7, %s454
      $region60: #{scale_output_forward.5} parent=55 // pred_fallthru
        _
    $region56: #{scale_output_forward.5} parent=5 // pred_fallthru
      _
  $region6: #{scale_output_forward.5} parent=0 // loop_footer
    %s17 = sadd.s32 1, %s13
  $region7: #{scale_output_forward.5} parent=0 // loop_footer_branch
    %12 = sbr.rel target = $region3
  $region8: #{scale_output_forward.5} parent=0 // loop_exit
    _

// kernel: scale_output_forward.4
$region0: #{scale_output_forward.4}
  #allocation0 [shape = 'u32[]', space=smem, size = 0x4, offset = 0x4, fixed_abs, tag = 'smem constant byte address 0x4 - core index']
  #allocation1 [shape = 'u32[144,128]{1,0:T(1,128)}', space=vmem, size = 0x12000, scoped, tag = 'internal scratch']
  #allocation2 [shape = 'f32[72,256]{1,0:T(8,128)}', space=vmem, size = 0x12000, scoped, tag = 'scratch operand']
  %s0 = inlined_call_operand.vmem [shape: f32[2,8,256], index: 0, kind: input, shape index: {}]
  %s1 = inlined_call_operand.vmem [shape: f32[2,8,1], index: 1, kind: input, shape index: {}]
  %s2 = inlined_call_operand.vmem [shape: f32[2,8,1], index: 2, kind: input, shape index: {}]
  %s3 = inlined_call_operand.vmem [shape: f32[8,1], index: 3, kind: input, shape index: {}]
  %s4 = inlined_call_operand.vmem [shape: f32[8,1], index: 4, kind: input, shape index: {}]
  %s5 = inlined_call_operand.vmem [shape: f32[9,256], index: 5, kind: input, shape index: {}]
  %s6 = inlined_call_operand.vmem [shape: bf16[8,72], index: 6, kind: input, shape index: {}]
  %s7 = inlined_call_operand.vmem [shape: f32[2,8,256], index: 7, kind: output, shape index: {0}]
  %s8 = inlined_call_operand.vmem [shape: f32[2,8,1], index: 8, kind: output, shape index: {1}]
  %s9 = inlined_call_operand.vmem [shape: f32[2,8,1], index: 9, kind: output, shape index: {2}]
  %10 = xla_tuple %s7, %s8, %s9
  %s11 = sld [smem:[#allocation0]]
  $region77: #{scale_output_forward.4} parent=0
    _
  %s13 = ssub.s32 1, %s11
  %s14 = scalar_select 0, %s13, %s11
  loop: start=0, step=1, limit=4
  $region2: #{scale_output_forward.4} parent=0 // loop_pre_header
    _
  $region3: #{scale_output_forward.4} parent=0 // loop_header
    %s16 = sphi 0, %s20
    %p17 = scmp.ge.s32.totalorder %s16, 4
    %s26 = sphi 0, %s28
    %s29 = sphi 0, %s26
    %s30 = sphi 0, %s29
    %s46 = sphi 0, %s30
    %s50 = sphi 0, %s50
    %s52 = sphi 0, %s50
    %s53 = sphi 0, %s52
    %s67 = sphi 0, %s53
    %s71 = sphi 0, %s71
    %s73 = sphi 0, %s71
    %s74 = sphi 0, %s73
    %s88 = sphi 0, %s74
    %s92 = sphi 0, %s92
    %s94 = sphi 0, %s92
    %s95 = sphi 0, %s94
    %s109 = sphi 0, %s95
    %s113 = sphi 0, %s113
    %s115 = sphi 0, %s113
    %s116 = sphi 0, %s115
    %s130 = sphi 0, %s116
    %s134 = sphi 0, %s134
    %s136 = sphi 0, %s134
    %s137 = sphi 0, %s136
    %s151 = sphi 0, %s137
    %s155 = sphi 0, %s155
    %s157 = sphi 0, %s155
    %s158 = sphi 0, %s157
    %s172 = sphi 0, %s158
    %s178 = sphi 0, %s180
    %s181 = sphi 0, %s178
    %s182 = sphi 0, %s181
    %s198 = sphi 0, %s182
    %s204 = sphi 0, %s206
    %s207 = sphi 0, %s204
    %s208 = sphi 0, %s207
    %s224 = sphi 0, %s208
    %s230 = sphi 0, %s232
    %s233 = sphi 0, %s230
    %s234 = sphi 0, %s233
    %s250 = sphi 0, %s234
  $region4: #{scale_output_forward.4} parent=0 // loop_header_branch
    %19 = sbr.rel (%p17) target = $region8
  $region5: #{scale_output_forward.4} parent=0 // loop_body
    %s21 = ssub.s32 %s16, 1
    %s22 = ssub.s32 %s16, 2
    %s23 = sadd.s32 %s16, 1
    %s24 = ssub.s32 %s16, %s23
    %p25 = scmp.eq.s32.totalorder %s24, 0
    %s27 = sadd.s32 %s26, 1
    %s28 = scalar_select %p25, %s26, %s27
    %p31 = pneg %p25
    %p32 = scmp.eq.s32.totalorder %s16, 1
    %p33 = por %p31, %p32
    %p34 = scmp.ne.s32.totalorder %s26, %s29
    %p35 = scmp.eq.s32.totalorder %s16, 0
    %p36 = por %p34, %p35
    %p37 = scmp.ne.s32.totalorder %s26, %s29
    %p38 = scmp.eq.s32.totalorder %s21, 1
    %p39 = por %p37, %p38
    %p40 = scmp.ne.s32.totalorder %s29, %s30
    %p41 = scmp.eq.s32.totalorder %s21, 0
    %p42 = por %p40, %p41
    %p43 = scmp.ne.s32.totalorder %s29, %s30
    %p44 = scmp.eq.s32.totalorder %s22, 1
    %p45 = por %p43, %p44
    %p47 = scmp.ne.s32.totalorder %s30, %s46
    %p48 = scmp.eq.s32.totalorder %s22, 0
    %p49 = por %p47, %p48
    %s51 = sadd.s32 %s50, 1
    %p54 = scmp.eq.s32.totalorder %s16, 1
    %p55 = scmp.ne.s32.totalorder %s50, %s52
    %p56 = scmp.eq.s32.totalorder %s16, 0
    %p57 = por %p55, %p56
    %p58 = scmp.ne.s32.totalorder %s50, %s52
    %p59 = scmp.eq.s32.totalorder %s21, 1
    %p60 = por %p58, %p59
    %p61 = scmp.ne.s32.totalorder %s52, %s53
    %p62 = scmp.eq.s32.totalorder %s21, 0
    %p63 = por %p61, %p62
    %p64 = scmp.ne.s32.totalorder %s52, %s53
    %p65 = scmp.eq.s32.totalorder %s22, 1
    %p66 = por %p64, %p65
    %p68 = scmp.ne.s32.totalorder %s53, %s67
    %p69 = scmp.eq.s32.totalorder %s22, 0
    %p70 = por %p68, %p69
    %s72 = sadd.s32 %s71, 1
    %p75 = scmp.eq.s32.totalorder %s16, 1
    %p76 = scmp.ne.s32.totalorder %s71, %s73
    %p77 = scmp.eq.s32.totalorder %s16, 0
    %p78 = por %p76, %p77
    %p79 = scmp.ne.s32.totalorder %s71, %s73
    %p80 = scmp.eq.s32.totalorder %s21, 1
    %p81 = por %p79, %p80
    %p82 = scmp.ne.s32.totalorder %s73, %s74
    %p83 = scmp.eq.s32.totalorder %s21, 0
    %p84 = por %p82, %p83
    %p85 = scmp.ne.s32.totalorder %s73, %s74
    %p86 = scmp.eq.s32.totalorder %s22, 1
    %p87 = por %p85, %p86
    %p89 = scmp.ne.s32.totalorder %s74, %s88
    %p90 = scmp.eq.s32.totalorder %s22, 0
    %p91 = por %p89, %p90
    %s93 = sadd.s32 %s92, 1
    %p96 = scmp.eq.s32.totalorder %s16, 1
    %p97 = scmp.ne.s32.totalorder %s92, %s94
    %p98 = scmp.eq.s32.totalorder %s16, 0
    %p99 = por %p97, %p98
    %p100 = scmp.ne.s32.totalorder %s92, %s94
    %p101 = scmp.eq.s32.totalorder %s21, 1
    %p102 = por %p100, %p101
    %p103 = scmp.ne.s32.totalorder %s94, %s95
    %p104 = scmp.eq.s32.totalorder %s21, 0
    %p105 = por %p103, %p104
    %p106 = scmp.ne.s32.totalorder %s94, %s95
    %p107 = scmp.eq.s32.totalorder %s22, 1
    %p108 = por %p106, %p107
    %p110 = scmp.ne.s32.totalorder %s95, %s109
    %p111 = scmp.eq.s32.totalorder %s22, 0
    %p112 = por %p110, %p111
    %s114 = sadd.s32 %s113, 1
    %p117 = scmp.eq.s32.totalorder %s16, 1
    %p118 = scmp.ne.s32.totalorder %s113, %s115
    %p119 = scmp.eq.s32.totalorder %s16, 0
    %p120 = por %p118, %p119
    %p121 = scmp.ne.s32.totalorder %s113, %s115
    %p122 = scmp.eq.s32.totalorder %s21, 1
    %p123 = por %p121, %p122
    %p124 = scmp.ne.s32.totalorder %s115, %s116
    %p125 = scmp.eq.s32.totalorder %s21, 0
    %p126 = por %p124, %p125
    %p127 = scmp.ne.s32.totalorder %s115, %s116
    %p128 = scmp.eq.s32.totalorder %s22, 1
    %p129 = por %p127, %p128
    %p131 = scmp.ne.s32.totalorder %s116, %s130
    %p132 = scmp.eq.s32.totalorder %s22, 0
    %p133 = por %p131, %p132
    %s135 = sadd.s32 %s134, 1
    %p138 = scmp.eq.s32.totalorder %s16, 1
    %p139 = scmp.ne.s32.totalorder %s134, %s136
    %p140 = scmp.eq.s32.totalorder %s16, 0
    %p141 = por %p139, %p140
    %p142 = scmp.ne.s32.totalorder %s134, %s136
    %p143 = scmp.eq.s32.totalorder %s21, 1
    %p144 = por %p142, %p143
    %p145 = scmp.ne.s32.totalorder %s136, %s137
    %p146 = scmp.eq.s32.totalorder %s21, 0
    %p147 = por %p145, %p146
    %p148 = scmp.ne.s32.totalorder %s136, %s137
    %p149 = scmp.eq.s32.totalorder %s22, 1
    %p150 = por %p148, %p149
    %p152 = scmp.ne.s32.totalorder %s137, %s151
    %p153 = scmp.eq.s32.totalorder %s22, 0
    %p154 = por %p152, %p153
    %s156 = sadd.s32 %s155, 1
    %p159 = scmp.eq.s32.totalorder %s16, 1
    %p160 = scmp.ne.s32.totalorder %s155, %s157
    %p161 = scmp.eq.s32.totalorder %s16, 0
    %p162 = por %p160, %p161
    %p163 = scmp.ne.s32.totalorder %s155, %s157
    %p164 = scmp.eq.s32.totalorder %s21, 1
    %p165 = por %p163, %p164
    %p166 = scmp.ne.s32.totalorder %s157, %s158
    %p167 = scmp.eq.s32.totalorder %s21, 0
    %p168 = por %p166, %p167
    %p169 = scmp.ne.s32.totalorder %s157, %s158
    %p170 = scmp.eq.s32.totalorder %s22, 1
    %p171 = por %p169, %p170
    %p173 = scmp.ne.s32.totalorder %s158, %s172
    %p174 = scmp.eq.s32.totalorder %s22, 0
    %p175 = por %p173, %p174
    %s176 = ssub.s32 %s16, %s23
    %p177 = scmp.eq.s32.totalorder %s176, 0
    %s179 = sadd.s32 %s178, 1
    %s180 = scalar_select %p177, %s178, %s179
    %p183 = pneg %p177
    %p184 = scmp.eq.s32.totalorder %s16, 1
    %p185 = por %p183, %p184
    %p186 = scmp.ne.s32.totalorder %s178, %s181
    %p187 = scmp.eq.s32.totalorder %s16, 0
    %p188 = por %p186, %p187
    %p189 = scmp.ne.s32.totalorder %s178, %s181
    %p190 = scmp.eq.s32.totalorder %s21, 1
    %p191 = por %p189, %p190
    %p192 = scmp.ne.s32.totalorder %s181, %s182
    %p193 = scmp.eq.s32.totalorder %s21, 0
    %p194 = por %p192, %p193
    %p195 = scmp.ne.s32.totalorder %s181, %s182
    %p196 = scmp.eq.s32.totalorder %s22, 1
    %p197 = por %p195, %p196
    %p199 = scmp.ne.s32.totalorder %s182, %s198
    %p200 = scmp.eq.s32.totalorder %s22, 0
    %p201 = por %p199, %p200
    %s202 = ssub.s32 %s16, %s23
    %p203 = scmp.eq.s32.totalorder %s202, 0
    %s205 = sadd.s32 %s204, 1
    %s206 = scalar_select %p203, %s204, %s205
    %p209 = pneg %p203
    %p210 = scmp.eq.s32.totalorder %s16, 1
    %p211 = por %p209, %p210
    %p212 = scmp.ne.s32.totalorder %s204, %s207
    %p213 = scmp.eq.s32.totalorder %s16, 0
    %p214 = por %p212, %p213
    %p215 = scmp.ne.s32.totalorder %s204, %s207
    %p216 = scmp.eq.s32.totalorder %s21, 1
    %p217 = por %p215, %p216
    %p218 = scmp.ne.s32.totalorder %s207, %s208
    %p219 = scmp.eq.s32.totalorder %s21, 0
    %p220 = por %p218, %p219
    %p221 = scmp.ne.s32.totalorder %s207, %s208
    %p222 = scmp.eq.s32.totalorder %s22, 1
    %p223 = por %p221, %p222
    %p225 = scmp.ne.s32.totalorder %s208, %s224
    %p226 = scmp.eq.s32.totalorder %s22, 0
    %p227 = por %p225, %p226
    %s228 = ssub.s32 %s16, %s23
    %p229 = scmp.eq.s32.totalorder %s228, 0
    %s231 = sadd.s32 %s230, 1
    %s232 = scalar_select %p229, %s230, %s231
    %p235 = pneg %p229
    %p236 = scmp.eq.s32.totalorder %s16, 1
    %p237 = por %p235, %p236
    %p238 = scmp.ne.s32.totalorder %s230, %s233
    %p239 = scmp.eq.s32.totalorder %s16, 0
    %p240 = por %p238, %p239
    %p241 = scmp.ne.s32.totalorder %s230, %s233
    %p242 = scmp.eq.s32.totalorder %s21, 1
    %p243 = por %p241, %p242
    %p244 = scmp.ne.s32.totalorder %s233, %s234
    %p245 = scmp.eq.s32.totalorder %s21, 0
    %p246 = por %p244, %p245
    %p247 = scmp.ne.s32.totalorder %s233, %s234
    %p248 = scmp.eq.s32.totalorder %s22, 1
    %p249 = por %p247, %p248
    %p251 = scmp.ne.s32.totalorder %s234, %s250
    %p252 = scmp.eq.s32.totalorder %s22, 0
    %p253 = por %p251, %p252
    %p254 = scmp.le.s32.totalorder 1, %s16
    %p255 = scmp.lt.s32.totalorder %s16, 3
    %p256 = pnand %p254, %p255
    %p257 = pneg %p256
    // Predicated region
    $region9: #{scale_output_forward.4} parent=5 // pred_check
      _
    $region10: #{scale_output_forward.4} parent=5 // pred_check_branch
      %259 = sbr.rel (%p256) target = $region12
    $region11: #{scale_output_forward.4} parent=5 // pred_region
      %s260 = ssub.s32 %s16, 1
      // Predicated region
      $region13: #{scale_output_forward.4} parent=11 // pred_check
        %p261 = pneg %p63
      $region14: #{scale_output_forward.4} parent=11 // pred_check_branch
        %263 = sbr.rel (%p261) target = $region16
      $region15: #{scale_output_forward.4} parent=11 // pred_region
        _
      $region16: #{scale_output_forward.4} parent=11 // pred_fallthru
        _
      // Predicated region
      $region17: #{scale_output_forward.4} parent=11 // pred_check
        %p264 = pneg %p84
      $region18: #{scale_output_forward.4} parent=11 // pred_check_branch
        %266 = sbr.rel (%p264) target = $region20
      $region19: #{scale_output_forward.4} parent=11 // pred_region
        _
      $region20: #{scale_output_forward.4} parent=11 // pred_fallthru
        _
      // Predicated region
      $region21: #{scale_output_forward.4} parent=11 // pred_check
        %p267 = pneg %p105
      $region22: #{scale_output_forward.4} parent=11 // pred_check_branch
        %269 = sbr.rel (%p267) target = $region24
      $region23: #{scale_output_forward.4} parent=11 // pred_region
        _
      $region24: #{scale_output_forward.4} parent=11 // pred_fallthru
        _
      // Predicated region
      $region25: #{scale_output_forward.4} parent=11 // pred_check
        %p270 = pneg %p126
      $region26: #{scale_output_forward.4} parent=11 // pred_check_branch
        %272 = sbr.rel (%p270) target = $region28
      $region27: #{scale_output_forward.4} parent=11 // pred_region
        _
      $region28: #{scale_output_forward.4} parent=11 // pred_fallthru
        _
      // Predicated region
      $region29: #{scale_output_forward.4} parent=11 // pred_check
        %p273 = pneg %p147
      $region30: #{scale_output_forward.4} parent=11 // pred_check_branch
        %275 = sbr.rel (%p273) target = $region32
      $region31: #{scale_output_forward.4} parent=11 // pred_region
        _
      $region32: #{scale_output_forward.4} parent=11 // pred_fallthru
        _
      // Predicated region
      $region33: #{scale_output_forward.4} parent=11 // pred_check
        %p276 = pneg %p168
      $region34: #{scale_output_forward.4} parent=11 // pred_check_branch
        %278 = sbr.rel (%p276) target = $region36
      $region35: #{scale_output_forward.4} parent=11 // pred_region
        _
      $region36: #{scale_output_forward.4} parent=11 // pred_fallthru
        _
    $region12: #{scale_output_forward.4} parent=5 // pred_fallthru
      _
    %p279 = scmp.lt.s32.totalorder %s16, 2
    // Predicated region
    $region37: #{scale_output_forward.4} parent=5 // pred_check
      %p280 = pneg %p279
    $region38: #{scale_output_forward.4} parent=5 // pred_check_branch
      %282 = sbr.rel (%p280) target = $region40
    $region39: #{scale_output_forward.4} parent=5 // pred_region
      // Predicated region
      $region41: #{scale_output_forward.4} parent=39 // pred_check
        %p283 = pneg %p36
      $region42: #{scale_output_forward.4} parent=39 // pred_check_branch
        %285 = sbr.rel (%p283) target = $region44
      $region43: #{scale_output_forward.4} parent=39 // pred_region
        %p286 = scmp.lt.s32.totalorder %s16, 1
        %s287 = scalar_select %p286, %s16, 1
        %s288 = smul.addr %s287, 2
        %s289 = smul.addr %s288, 8
        %s290 = scalar_lea.vmem %s0, %s289
      $region44: #{scale_output_forward.4} parent=39 // pred_fallthru
        _
    $region40: #{scale_output_forward.4} parent=5 // pred_fallthru
      _
    %p291 = scmp.le.s32.totalorder 1, %s16
    %p292 = scmp.lt.s32.totalorder %s16, 3
    %p293 = pnand %p291, %p292
    %p294 = pneg %p293
    // Predicated region
    $region45: #{scale_output_forward.4} parent=5 // pred_check
      _
    $region46: #{scale_output_forward.4} parent=5 // pred_check_branch
      %296 = sbr.rel (%p293) target = $region48
    $region47: #{scale_output_forward.4} parent=5 // pred_region
      %s297 = ssub.s32 %s16, 1
      %p298 = scmp.lt.s32.totalorder %s21, 1
      %s299 = scalar_select %p298, %s21, 1
      %s300 = smul.addr %s299, 2
      %s301 = smul.addr %s300, 8
      %s302 = scalar_lea.vmem %s0, %s301
      %p303 = pneg %p42
      %p304 = pneg %p39
      %p305 = pneg %p63
      %p306 = pneg %p60
      %p307 = pneg %p84
      %p308 = pneg %p81
      %p309 = pneg %p105
      %p310 = pneg %p102
      %p311 = pneg %p126
      %p312 = pneg %p123
      %p313 = pneg %p147
      %p314 = pneg %p144
      %p315 = pneg %p168
      %p316 = pneg %p165
      %p317 = pneg %p194
      %p318 = pneg %p191
      %p319 = scmp.lt.s32.totalorder %s21, 1
      %s320 = scalar_select %p319, %s21, 1
      %s321 = smul.addr %s320, 2
      %s322 = smul.addr %s321, 8
      %s323 = scalar_lea.vmem %s7, %s322
      %p324 = pneg %p220
      %p325 = pneg %p217
      %p326 = scmp.lt.s32.totalorder %s21, 1
      %s327 = scalar_select %p326, %s21, 1
      %s328 = smul.addr %s327, 8
      %s329 = scalar_lea.vmem %s8, %s328
      %p330 = pneg %p246
      %p331 = pneg %p243
      %p332 = scmp.lt.s32.totalorder %s21, 1
      %s333 = scalar_select %p332, %s21, 1
      %s334 = smul.addr %s333, 8
      %s335 = scalar_lea.vmem %s9, %s334
      %p336 = scmp.lt.s32.totalorder %s21, 1
      %s337 = scalar_select %p336, %s21, 1
      %s338 = smul.addr %s337, 2
      %s339 = smul.addr %s338, 8
      %s340 = scalar_lea.vmem %s0, %s339
      %p341 = scmp.lt.s32.totalorder %s21, 1
      %s342 = scalar_select %p341, %s21, 1
      %s343 = smul.addr %s342, 2
      %s344 = smul.addr %s343, 8
      %s345 = scalar_lea.vmem %s7, %s344
      %p346 = scmp.lt.s32.totalorder %s21, 1
      %s347 = scalar_select %p346, %s21, 1
      %s348 = smul.addr %s347, 8
      %s349 = scalar_lea.vmem %s8, %s348
      %p350 = scmp.lt.s32.totalorder %s21, 1
      %s351 = scalar_select %p350, %s21, 1
      %s352 = smul.addr %s351, 8
      %s353 = scalar_lea.vmem %s9, %s352
      %v355 = vld [vmem:[%s340] sm:$0xff]
      %v356 = vld [vmem:[%s340 + $0x8] sm:$0xff]
      %v357 = vld [vmem:[%s1] sm:$0xff]
      %v358 = vld [vmem:[%s1 + $0x8] sm:$0xff]
      %v359 = vld [vmem:[%s2] sm:$0xff]
      %v360 = vld [vmem:[%s2 + $0x8] sm:$0xff]
      %v361 = vld [vmem:[%s3] sm:$0xff]
      %v362 = vld [vmem:[%s4] sm:$0xff]
      %vm363 = vcmask 7168
      %v364 = vsel %vm363, %v357, 0.0
      %v365 = vsel %vm363, %v358, 0.0
      %v366 = vadd.f32 %v364, %v365
      %v367 = vsel %vm363, %v359, 0.0
      %v368 = vsel %vm363, %v360, 0.0
      %v369 = vadd.f32 %v367, %v368
      %v370 = vmul.f32 %v366, 0.001953125
      %v371 = vmul.f32 %v369, 0.001953125
      %v372 = vmul.f32 %v370, %v370
      %v373 = vsub.f32 %v371, %v372
      %v374 = vmax.f32 %v373, 0.0
      %v375 = vadd.f32 %v374, 1e-05
      %v376 = vrsqrt.pop %v375
      %v377 = vmul.f32 %v361, %v376
      %v378 = vmul.f32 %v370, %v377
      %v379 = vsub.f32 %v362, %v378
      %381 = vset.pattern.permute.xlu0 0
      %382 = vperm.xlu0 %381, %v377
      %v383 = vpop.permute.xlu0 %382
      %v385 = vmul.f32 %v355, %v383
      %v386 = vmul.f32 %v356, %v383
      %388 = vset.pattern.permute.xlu0 0
      %389 = vperm.xlu0 %388, %v379
      %v390 = vpop.permute.xlu0 %389
      %v392 = vadd.f32 %v385, %v390
      %v393 = vadd.f32 %v386, %v390
      %v394 = vmax.f32 %v392, 0.0
      %v395 = vmax.f32 %v393, 0.0
      %396 = vrot.lane.b32.xlu0 %v394, 17
      %v397 = vpop.permute.xlu0 %396
      %398 = vrot.lane.b32.xlu0 %v395, 17
      %v399 = vpop.permute.xlu0 %398
      %v400 = vlaneseq
      %v401 = vand.u32 %v400, 127
      %vm402 = vcmp.lt.s32.totalorder %v401, 17
      %v403 = vsel %vm402, %v397, %v399
      %v404 = vsel %vm402, %v399, %v397
      %v405 = vld [vmem:[%s5] ss:$8 sm:$0x3]
      %v407 = vlaneseq
      %v408 = vshrl.u32 %v407, 7
      %v409 = vsub.s32 0, %v408
      %v410 = vrot.slane %v405, %v409
      %v411 = vlaneseq
      %v412 = vshrl.u32 %v411, 7
      %v413 = vsub.s32 1, %v412
      %v414 = vrot.slane %v405, %v413
      %v417 = vmul.f32 %v404, %v410
      %v418 = vmul.f32 %v403, %v414
      %419 = vst [vmem:[#allocation2] sm:$0xff] %v417
      %420 = vst [vmem:[#allocation2 + $0x8] sm:$0xff] %v418
      %421 = vrot.lane.b32.xlu0 %v394, 16
      %v422 = vpop.permute.xlu0 %421
      %423 = vrot.lane.b32.xlu0 %v395, 16
      %v424 = vpop.permute.xlu0 %423
      %vm425 = vcmp.lt.s32.totalorder %v401, 16
      %v426 = vsel %vm425, %v422, %v424
      %v427 = vsel %vm425, %v424, %v422
      %s428 = scalar_lea.vmem %s5, 1
      %v429 = vld [vmem:[%s428] ss:$8 sm:$0x3]
      %v431 = vlaneseq
      %v432 = vshrl.u32 %v431, 7
      %v433 = vsub.s32 0, %v432
      %v434 = vrot.slane %v429, %v433
      %v435 = vlaneseq
      %v436 = vshrl.u32 %v435, 7
      %v437 = vsub.s32 1, %v436
      %v438 = vrot.slane %v429, %v437
      %v441 = vmul.f32 %v427, %v434
      %v442 = vmul.f32 %v426, %v438
      %443 = vst [vmem:[#allocation2 + $0x10] sm:$0xff] %v441
      %444 = vst [vmem:[#allocation2 + $0x18] sm:$0xff] %v442
      %445 = vrot.lane.b32.xlu0 %v394, 15
      %v446 = vpop.permute.xlu0 %445
      %447 = vrot.lane.b32.xlu0 %v395, 15
      %v448 = vpop.permute.xlu0 %447
      %vm449 = vcmp.lt.s32.totalorder %v401, 15
      %v450 = vsel %vm449, %v446, %v448
      %v451 = vsel %vm449, %v448, %v446
      %s452 = scalar_lea.vmem %s5, 2
      %v453 = vld [vmem:[%s452] ss:$8 sm:$0x3]
      %v455 = vlaneseq
      %v456 = vshrl.u32 %v455, 7
      %v457 = vsub.s32 0, %v456
      %v458 = vrot.slane %v453, %v457
      %v459 = vlaneseq
      %v460 = vshrl.u32 %v459, 7
      %v461 = vsub.s32 1, %v460
      %v462 = vrot.slane %v453, %v461
      %v465 = vmul.f32 %v451, %v458
      %v466 = vmul.f32 %v450, %v462
      %467 = vst [vmem:[#allocation2 + $0x20] sm:$0xff] %v465
      %468 = vst [vmem:[#allocation2 + $0x28] sm:$0xff] %v466
      %469 = vrot.lane.b32.xlu0 %v394, 1
      %v470 = vpop.permute.xlu0 %469
      %471 = vrot.lane.b32.xlu0 %v395, 1
      %v472 = vpop.permute.xlu0 %471
      %vm473 = vcmp.lt.s32.totalorder %v401, 1
      %v474 = vsel %vm473, %v470, %v472
      %v475 = vsel %vm473, %v472, %v470
      %s476 = scalar_lea.vmem %s5, 3
      %v477 = vld [vmem:[%s476] ss:$8 sm:$0x3]
      %v479 = vlaneseq
      %v480 = vshrl.u32 %v479, 7
      %v481 = vsub.s32 0, %v480
      %v482 = vrot.slane %v477, %v481
      %v483 = vlaneseq
      %v484 = vshrl.u32 %v483, 7
      %v485 = vsub.s32 1, %v484
      %v486 = vrot.slane %v477, %v485
      %v489 = vmul.f32 %v475, %v482
      %v490 = vmul.f32 %v474, %v486
      %491 = vst [vmem:[#allocation2 + $0x30] sm:$0xff] %v489
      %492 = vst [vmem:[#allocation2 + $0x38] sm:$0xff] %v490
      %493 = vst [vmem:[#allocation2 + $0x40] sm:$0xff] %v394
      %494 = vst [vmem:[#allocation2 + $0x48] sm:$0xff] %v395
      %495 = vrot.lane.b32.xlu0 %v394, 127
      %v496 = vpop.permute.xlu0 %495
      %497 = vrot.lane.b32.xlu0 %v395, 127
      %v498 = vpop.permute.xlu0 %497
      %vm499 = vcmp.lt.s32.totalorder %v401, 127
      %v500 = vsel %vm499, %v496, %v498
      %v501 = vsel %vm499, %v498, %v496
      %s502 = scalar_lea.vmem %s5, 5
      %v503 = vld [vmem:[%s502] ss:$8 sm:$0x3]
      %v505 = vlaneseq
      %v506 = vshrl.u32 %v505, 7
      %v507 = vsub.s32 0, %v506
      %v508 = vrot.slane %v503, %v507
      %v509 = vlaneseq
      %v510 = vshrl.u32 %v509, 7
      %v511 = vsub.s32 1, %v510
      %v512 = vrot.slane %v503, %v511
      %v515 = vmul.f32 %v500, %v508
      %v516 = vmul.f32 %v501, %v512
      %517 = vst [vmem:[#allocation2 + $0x50] sm:$0xff] %v515
      %518 = vst [vmem:[#allocation2 + $0x58] sm:$0xff] %v516
      %519 = vrot.lane.b32.xlu0 %v394, 113
      %v520 = vpop.permute.xlu0 %519
      %521 = vrot.lane.b32.xlu0 %v395, 113
      %v522 = vpop.permute.xlu0 %521
      %vm523 = vcmp.lt.s32.totalorder %v401, 113
      %v524 = vsel %vm523, %v520, %v522
      %v525 = vsel %vm523, %v522, %v520
      %s526 = scalar_lea.vmem %s5, 6
      %v527 = vld [vmem:[%s526] ss:$8 sm:$0x3]
      %v529 = vlaneseq
      %v530 = vshrl.u32 %v529, 7
      %v531 = vsub.s32 0, %v530
      %v532 = vrot.slane %v527, %v531
      %v533 = vlaneseq
      %v534 = vshrl.u32 %v533, 7
      %v535 = vsub.s32 1, %v534
      %v536 = vrot.slane %v527, %v535
      %v539 = vmul.f32 %v524, %v532
      %v540 = vmul.f32 %v525, %v536
      %541 = vst [vmem:[#allocation2 + $0x60] sm:$0xff] %v539
      %542 = vst [vmem:[#allocation2 + $0x68] sm:$0xff] %v540
      %543 = vrot.lane.b32.xlu0 %v394, 112
      %v544 = vpop.permute.xlu0 %543
      %545 = vrot.lane.b32.xlu0 %v395, 112
      %v546 = vpop.permute.xlu0 %545
      %vm547 = vcmp.lt.s32.totalorder %v401, 112
      %v548 = vsel %vm547, %v544, %v546
      %v549 = vsel %vm547, %v546, %v544
      %s550 = scalar_lea.vmem %s5, 7
      %v551 = vld [vmem:[%s550] ss:$8 sm:$0x3]
      %v553 = vlaneseq
      %v554 = vshrl.u32 %v553, 7
      %v555 = vsub.s32 0, %v554
      %v556 = vrot.slane %v551, %v555
      %v557 = vlaneseq
      %v558 = vshrl.u32 %v557, 7
      %v559 = vsub.s32 1, %v558
      %v560 = vrot.slane %v551, %v559
      %v563 = vmul.f32 %v548, %v556
      %v564 = vmul.f32 %v549, %v560
      %565 = vst [vmem:[#allocation2 + $0x70] sm:$0xff] %v563
      %566 = vst [vmem:[#allocation2 + $0x78] sm:$0xff] %v564
      %567 = vrot.lane.b32.xlu0 %v394, 111
      %v568 = vpop.permute.xlu0 %567
      %569 = vrot.lane.b32.xlu0 %v395, 111
      %v570 = vpop.permute.xlu0 %569
      %vm571 = vcmp.lt.s32.totalorder %v401, 111
      %v572 = vsel %vm571, %v568, %v570
      %v573 = vsel %vm571, %v570, %v568
      %s574 = scalar_lea.vmem %s5, 16
      %v575 = vld [vmem:[%s574] ss:$8 sm:$0x3]
      %v577 = vlaneseq
      %v578 = vshrl.u32 %v577, 7
      %v579 = vsub.s32 0, %v578
      %v580 = vrot.slane %v575, %v579
      %v581 = vlaneseq
      %v582 = vshrl.u32 %v581, 7
      %v583 = vsub.s32 1, %v582
      %v584 = vrot.slane %v575, %v583
      %v587 = vmul.f32 %v572, %v580
      %v588 = vmul.f32 %v573, %v584
      %589 = vst [vmem:[#allocation2 + $0x80] sm:$0xff] %v587
      %590 = vst [vmem:[#allocation2 + $0x88] sm:$0xff] %v588
      %v591 = vld [vmem:[%s6] sm:$0xf]
      %v592 = vld [vmem:[#allocation2] sm:$0xff]
      %v593 = vld [vmem:[#allocation2 + $0x8] sm:$0xff]
      %v594 = vld [vmem:[#allocation2 + $0x10] sm:$0xff]
      %v595 = vld [vmem:[#allocation2 + $0x18] sm:$0xff]
      %v596 = vld [vmem:[#allocation2 + $0x20] sm:$0xff]
      %v597 = vld [vmem:[#allocation2 + $0x28] sm:$0xff]
      %v598 = vld [vmem:[#allocation2 + $0x30] sm:$0xff]
      %v599 = vld [vmem:[#allocation2 + $0x38] sm:$0xff]
      %v600 = vld [vmem:[#allocation2 + $0x40] sm:$0xff]
      %v601 = vld [vmem:[#allocation2 + $0x48] sm:$0xff]
      %v602 = vld [vmem:[#allocation2 + $0x50] sm:$0xff]
      %v603 = vld [vmem:[#allocation2 + $0x58] sm:$0xff]
      %v604 = vld [vmem:[#allocation2 + $0x60] sm:$0xff]
      %v605 = vld [vmem:[#allocation2 + $0x68] sm:$0xff]
      %v606 = vld [vmem:[#allocation2 + $0x70] sm:$0xff]
      %v607 = vld [vmem:[#allocation2 + $0x78] sm:$0xff]
      %v608 = vld [vmem:[#allocation2 + $0x80] sm:$0xff]
      %v609 = vld [vmem:[#allocation2 + $0x88] sm:$0xff]
      %v610 = vpack.c.bf16 %v594, %v592
      %v611 = vpack.c.bf16 %v595, %v593
      %v612 = vpack.c.bf16 %v598, %v596
      %v613 = vpack.c.bf16 %v599, %v597
      %v614 = vpack.c.bf16 %v602, %v600
      %v615 = vpack.c.bf16 %v603, %v601
      %v616 = vpack.c.bf16 %v606, %v604
      %v617 = vpack.c.bf16 %v607, %v605
      %v618 = vpack.c.bf16 %v608, %v608
      %v619 = vpack.c.bf16 %v609, %v609
      %vm620 = vcmask 588800
      %v622 = vsel %vm620, %v591, 0
      %vm624 = vcmask 1043456
      %v626 = vsel %vm624, %v618, 0
      %v629 = vsel %vm624, %v619, 0
      %631 = vmatprep.subr.bf16.mxu0 0
      %632 = vmatpush1.bf16.msra.mxu0 0
      %633 = vmatprep.subr.bf16.mxu0 0
      %634 = vmatpush1.bf16.msra.mxu0 0
      %635 = vmatprep.subr.bf16.mxu0 0
      %636 = vmatpush1.bf16.msra.mxu0 0
      %637 = vmatprep.subr.bf16.mxu0 %v629
      %638 = vmatpush1.bf16.msra.mxu0 %v626
      %639 = vmatprep.subr.bf16.mxu0 %v617
      %640 = vmatpush1.bf16.msra.mxu0 %v616
      %641 = vmatprep.subr.bf16.mxu0 %v615
      %642 = vmatpush1.bf16.msra.mxu0 %v614
      %643 = vmatprep.subr.bf16.mxu0 %v613
      %644 = vmatpush1.bf16.msra.mxu0 %v612
      %645 = vmatprep.subr.bf16.mxu0 %v611
      %646 = vmatpush1.bf16.msra.mxu0 %v610
      %647 = vmatprep.subr.bf16.mxu0 0
      %648 = vmatpush2.bf16.msra.mxu0 0
      %649 = vmatprep.subr.bf16.mxu0 0
      %650 = vmatpush2.bf16.msra.mxu0 0
      %651 = vmatprep.subr.bf16.mxu0 0
      %652 = vmatpush2.bf16.msra.mxu0 0
      %653 = vmatprep.subr.bf16.mxu0 0
      %654 = vmatpush2.bf16.msra.mxu0 0
      %655 = vmatprep.subr.bf16.mxu0 0
      %656 = vmatpush2.bf16.msra.mxu0 0
      %657 = vmatprep.subr.bf16.mxu0 0
      %658 = vmatpush2.bf16.msra.mxu0 0
      %659 = vmatprep.subr.bf16.mxu0 0
      %660 = vmatpush2.bf16.msra.mxu0 0
      %661 = vmatprep.subr.bf16.mxu0 0
      %662 = vmatpush2.bf16.msra.mxu0 0
      %663 = vmatprep.mubr.bf16.mxu0 0
      %664 = vmatmul.mubr.bf16.gmra.mxu0 %v622
      %v665 = vpop.f32.mrf.mxu0
      %v666 = vadd.f32 0.0, %v665
      %v667 = vpop.f32.mrf.mxu0
      %v668 = vadd.f32 0.0, %v667
      %v669 = vpop.f32.mrf.mxu0
      %v670 = vpop.f32.mrf.mxu0
      %671 = vdwg.mxu0
      %672 = vst [vmem:[%s345] sm:$0xff] %v666
      %673 = vst [vmem:[%s345 + $0x8] sm:$0xff] %v668
      %v674 = vadd.f32 %v666, %v668
      %675 = vadd.xlane.f32.xlu0 %v674
      %v676 = vpop.xlane.xlu0 %675
      %677 = vst.msk [vmem:[%s349] sm:$0xff] %vm363, %v676
      %v678 = vmul.f32 %v666, %v666
      %v679 = vmul.f32 %v668, %v668
      %v680 = vadd.f32 %v678, %v679
      %681 = vadd.xlane.f32.xlu0 %v680
      %v682 = vpop.xlane.xlu0 %681
      %683 = vst.msk [vmem:[%s353] sm:$0xff] %vm363, %v682
      %p684 = scmp.lt.s32.totalorder %s21, 1
      %s685 = scalar_select %p684, %s21, 1
      %s686 = smul.addr %s685, 2
      %s687 = smul.addr %s686, 8
      %s688 = scalar_lea.vmem %s7, %s687
      %p689 = scmp.lt.s32.totalorder %s21, 1
      %s690 = scalar_select %p689, %s21, 1
      %s691 = smul.addr %s690, 8
      %s692 = scalar_lea.vmem %s8, %s691
      %p693 = scmp.lt.s32.totalorder %s21, 1
      %s694 = scalar_select %p693, %s21, 1
      %s695 = smul.addr %s694, 8
      %s696 = scalar_lea.vmem %s9, %s695
      // Predicated region
      $region49: #{scale_output_forward.4} parent=47 // pred_check
        %p697 = pneg %p191
      $region50: #{scale_output_forward.4} parent=47 // pred_check_branch
        %699 = sbr.rel (%p697) target = $region52
      $region51: #{scale_output_forward.4} parent=47 // pred_region
        _
      $region52: #{scale_output_forward.4} parent=47 // pred_fallthru
        _
      // Predicated region
      $region53: #{scale_output_forward.4} parent=47 // pred_check
        %p700 = pneg %p217
      $region54: #{scale_output_forward.4} parent=47 // pred_check_branch
        %702 = sbr.rel (%p700) target = $region56
      $region55: #{scale_output_forward.4} parent=47 // pred_region
        _
      $region56: #{scale_output_forward.4} parent=47 // pred_fallthru
        _
      // Predicated region
      $region57: #{scale_output_forward.4} parent=47 // pred_check
        %p703 = pneg %p243
      $region58: #{scale_output_forward.4} parent=47 // pred_check_branch
        %705 = sbr.rel (%p703) target = $region60
      $region59: #{scale_output_forward.4} parent=47 // pred_region
        _
      $region60: #{scale_output_forward.4} parent=47 // pred_fallthru
        _
    $region48: #{scale_output_forward.4} parent=5 // pred_fallthru
      _
    %p706 = scmp.le.s32.totalorder 2, %s16
    // Predicated region
    $region61: #{scale_output_forward.4} parent=5 // pred_check
      %p707 = pneg %p706
    $region62: #{scale_output_forward.4} parent=5 // pred_check_branch
      %709 = sbr.rel (%p707) target = $region64
    $region63: #{scale_output_forward.4} parent=5 // pred_region
      %s710 = ssub.s32 %s16, 2
      // Predicated region
      $region65: #{scale_output_forward.4} parent=63 // pred_check
        %p711 = pneg %p197
      $region66: #{scale_output_forward.4} parent=63 // pred_check_branch
        %713 = sbr.rel (%p711) target = $region68
      $region67: #{scale_output_forward.4} parent=63 // pred_region
        %p714 = scmp.lt.s32.totalorder %s22, 1
        %s715 = scalar_select %p714, %s22, 1
        %s716 = smul.addr %s715, 2
        %s717 = smul.addr %s716, 8
        %s718 = scalar_lea.vmem %s7, %s717
      $region68: #{scale_output_forward.4} parent=63 // pred_fallthru
        _
      // Predicated region
      $region69: #{scale_output_forward.4} parent=63 // pred_check
        %p719 = pneg %p223
      $region70: #{scale_output_forward.4} parent=63 // pred_check_branch
        %721 = sbr.rel (%p719) target = $region72
      $region71: #{scale_output_forward.4} parent=63 // pred_region
        %p722 = scmp.lt.s32.totalorder %s22, 1
        %s723 = scalar_select %p722, %s22, 1
        %s724 = smul.addr %s723, 8
        %s725 = scalar_lea.vmem %s8, %s724
      $region72: #{scale_output_forward.4} parent=63 // pred_fallthru
        _
      // Predicated region
      $region73: #{scale_output_forward.4} parent=63 // pred_check
        %p726 = pneg %p249
      $region74: #{scale_output_forward.4} parent=63 // pred_check_branch
        %728 = sbr.rel (%p726) target = $region76
      $region75: #{scale_output_forward.4} parent=63 // pred_region
        %p729 = scmp.lt.s32.totalorder %s22, 1
        %s730 = scalar_select %p729, %s22, 1
        %s731 = smul.addr %s730, 8
        %s732 = scalar_lea.vmem %s9, %s731
      $region76: #{scale_output_forward.4} parent=63 // pred_fallthru
        _
    $region64: #{scale_output_forward.4} parent=5 // pred_fallthru
      _
  $region6: #{scale_output_forward.4} parent=0 // loop_footer
    %s20 = sadd.s32 1, %s16
  $region7: #{scale_output_forward.4} parent=0 // loop_footer_branch
    %15 = sbr.rel target = $region3
  $region8: #{scale_output_forward.4} parent=0 // loop_exit
    _

// kernel: scale_output_forward.3
$region0: #{scale_output_forward.3}
  #allocation0 [shape = 'u32[]', space=smem, size = 0x4, offset = 0x4, fixed_abs, tag = 'smem constant byte address 0x4 - core index']
  #allocation1 [shape = 'u32[144,128]{1,0:T(1,128)}', space=vmem, size = 0x12000, scoped, tag = 'internal scratch']
  #allocation2 [shape = 'f32[36,256]{1,0:T(8,128)}', space=vmem, size = 0xa000, scoped, tag = 'scratch operand']
  %s0 = inlined_call_operand.vmem [shape: f32[2,4,256], index: 0, kind: input, shape index: {}]
  %s1 = inlined_call_operand.vmem [shape: f32[9,256], index: 1, kind: input, shape index: {}]
  %s2 = inlined_call_operand.vmem [shape: bf16[8,36], index: 2, kind: input, shape index: {}]
  %s3 = inlined_call_operand.vmem [shape: f32[2,8,256], index: 3, kind: output, shape index: {0}]
  %s4 = inlined_call_operand.vmem [shape: f32[2,8,1], index: 4, kind: output, shape index: {1}]
  %s5 = inlined_call_operand.vmem [shape: f32[2,8,1], index: 5, kind: output, shape index: {2}]
  %6 = xla_tuple %s3, %s4, %s5
  %s7 = sld [smem:[#allocation0]]
  $region61: #{scale_output_forward.3} parent=0
    _
  %s9 = ssub.s32 1, %s7
  %s10 = scalar_select 0, %s9, %s7
  loop: start=0, step=1, limit=4
  $region2: #{scale_output_forward.3} parent=0 // loop_pre_header
    _
  $region3: #{scale_output_forward.3} parent=0 // loop_header
    %s12 = sphi 0, %s16
    %p13 = scmp.ge.s32.totalorder %s12, 4
    %s22 = sphi 0, %s24
    %s25 = sphi 0, %s22
    %s26 = sphi 0, %s25
    %s42 = sphi 0, %s26
    %s46 = sphi 0, %s46
    %s48 = sphi 0, %s46
    %s49 = sphi 0, %s48
    %s63 = sphi 0, %s49
    %s67 = sphi 0, %s67
    %s69 = sphi 0, %s67
    %s70 = sphi 0, %s69
    %s84 = sphi 0, %s70
    %s90 = sphi 0, %s92
    %s93 = sphi 0, %s90
    %s94 = sphi 0, %s93
    %s110 = sphi 0, %s94
    %s116 = sphi 0, %s118
    %s119 = sphi 0, %s116
    %s120 = sphi 0, %s119
    %s136 = sphi 0, %s120
    %s142 = sphi 0, %s144
    %s145 = sphi 0, %s142
    %s146 = sphi 0, %s145
    %s162 = sphi 0, %s146
  $region4: #{scale_output_forward.3} parent=0 // loop_header_branch
    %15 = sbr.rel (%p13) target = $region8
  $region5: #{scale_output_forward.3} parent=0 // loop_body
    %s17 = ssub.s32 %s12, 1
    %s18 = ssub.s32 %s12, 2
    %s19 = sadd.s32 %s12, 1
    %s20 = ssub.s32 %s12, %s19
    %p21 = scmp.eq.s32.totalorder %s20, 0
    %s23 = sadd.s32 %s22, 1
    %s24 = scalar_select %p21, %s22, %s23
    %p27 = pneg %p21
    %p28 = scmp.eq.s32.totalorder %s12, 1
    %p29 = por %p27, %p28
    %p30 = scmp.ne.s32.totalorder %s22, %s25
    %p31 = scmp.eq.s32.totalorder %s12, 0
    %p32 = por %p30, %p31
    %p33 = scmp.ne.s32.totalorder %s22, %s25
    %p34 = scmp.eq.s32.totalorder %s17, 1
    %p35 = por %p33, %p34
    %p36 = scmp.ne.s32.totalorder %s25, %s26
    %p37 = scmp.eq.s32.totalorder %s17, 0
    %p38 = por %p36, %p37
    %p39 = scmp.ne.s32.totalorder %s25, %s26
    %p40 = scmp.eq.s32.totalorder %s18, 1
    %p41 = por %p39, %p40
    %p43 = scmp.ne.s32.totalorder %s26, %s42
    %p44 = scmp.eq.s32.totalorder %s18, 0
    %p45 = por %p43, %p44
    %s47 = sadd.s32 %s46, 1
    %p50 = scmp.eq.s32.totalorder %s12, 1
    %p51 = scmp.ne.s32.totalorder %s46, %s48
    %p52 = scmp.eq.s32.totalorder %s12, 0
    %p53 = por %p51, %p52
    %p54 = scmp.ne.s32.totalorder %s46, %s48
    %p55 = scmp.eq.s32.totalorder %s17, 1
    %p56 = por %p54, %p55
    %p57 = scmp.ne.s32.totalorder %s48, %s49
    %p58 = scmp.eq.s32.totalorder %s17, 0
    %p59 = por %p57, %p58
    %p60 = scmp.ne.s32.totalorder %s48, %s49
    %p61 = scmp.eq.s32.totalorder %s18, 1
    %p62 = por %p60, %p61
    %p64 = scmp.ne.s32.totalorder %s49, %s63
    %p65 = scmp.eq.s32.totalorder %s18, 0
    %p66 = por %p64, %p65
    %s68 = sadd.s32 %s67, 1
    %p71 = scmp.eq.s32.totalorder %s12, 1
    %p72 = scmp.ne.s32.totalorder %s67, %s69
    %p73 = scmp.eq.s32.totalorder %s12, 0
    %p74 = por %p72, %p73
    %p75 = scmp.ne.s32.totalorder %s67, %s69
    %p76 = scmp.eq.s32.totalorder %s17, 1
    %p77 = por %p75, %p76
    %p78 = scmp.ne.s32.totalorder %s69, %s70
    %p79 = scmp.eq.s32.totalorder %s17, 0
    %p80 = por %p78, %p79
    %p81 = scmp.ne.s32.totalorder %s69, %s70
    %p82 = scmp.eq.s32.totalorder %s18, 1
    %p83 = por %p81, %p82
    %p85 = scmp.ne.s32.totalorder %s70, %s84
    %p86 = scmp.eq.s32.totalorder %s18, 0
    %p87 = por %p85, %p86
    %s88 = ssub.s32 %s12, %s19
    %p89 = scmp.eq.s32.totalorder %s88, 0
    %s91 = sadd.s32 %s90, 1
    %s92 = scalar_select %p89, %s90, %s91
    %p95 = pneg %p89
    %p96 = scmp.eq.s32.totalorder %s12, 1
    %p97 = por %p95, %p96
    %p98 = scmp.ne.s32.totalorder %s90, %s93
    %p99 = scmp.eq.s32.totalorder %s12, 0
    %p100 = por %p98, %p99
    %p101 = scmp.ne.s32.totalorder %s90, %s93
    %p102 = scmp.eq.s32.totalorder %s17, 1
    %p103 = por %p101, %p102
    %p104 = scmp.ne.s32.totalorder %s93, %s94
    %p105 = scmp.eq.s32.totalorder %s17, 0
    %p106 = por %p104, %p105
    %p107 = scmp.ne.s32.totalorder %s93, %s94
    %p108 = scmp.eq.s32.totalorder %s18, 1
    %p109 = por %p107, %p108
    %p111 = scmp.ne.s32.totalorder %s94, %s110
    %p112 = scmp.eq.s32.totalorder %s18, 0
    %p113 = por %p111, %p112
    %s114 = ssub.s32 %s12, %s19
    %p115 = scmp.eq.s32.totalorder %s114, 0
    %s117 = sadd.s32 %s116, 1
    %s118 = scalar_select %p115, %s116, %s117
    %p121 = pneg %p115
    %p122 = scmp.eq.s32.totalorder %s12, 1
    %p123 = por %p121, %p122
    %p124 = scmp.ne.s32.totalorder %s116, %s119
    %p125 = scmp.eq.s32.totalorder %s12, 0
    %p126 = por %p124, %p125
    %p127 = scmp.ne.s32.totalorder %s116, %s119
    %p128 = scmp.eq.s32.totalorder %s17, 1
    %p129 = por %p127, %p128
    %p130 = scmp.ne.s32.totalorder %s119, %s120
    %p131 = scmp.eq.s32.totalorder %s17, 0
    %p132 = por %p130, %p131
    %p133 = scmp.ne.s32.totalorder %s119, %s120
    %p134 = scmp.eq.s32.totalorder %s18, 1
    %p135 = por %p133, %p134
    %p137 = scmp.ne.s32.totalorder %s120, %s136
    %p138 = scmp.eq.s32.totalorder %s18, 0
    %p139 = por %p137, %p138
    %s140 = ssub.s32 %s12, %s19
    %p141 = scmp.eq.s32.totalorder %s140, 0
    %s143 = sadd.s32 %s142, 1
    %s144 = scalar_select %p141, %s142, %s143
    %p147 = pneg %p141
    %p148 = scmp.eq.s32.totalorder %s12, 1
    %p149 = por %p147, %p148
    %p150 = scmp.ne.s32.totalorder %s142, %s145
    %p151 = scmp.eq.s32.totalorder %s12, 0
    %p152 = por %p150, %p151
    %p153 = scmp.ne.s32.totalorder %s142, %s145
    %p154 = scmp.eq.s32.totalorder %s17, 1
    %p155 = por %p153, %p154
    %p156 = scmp.ne.s32.totalorder %s145, %s146
    %p157 = scmp.eq.s32.totalorder %s17, 0
    %p158 = por %p156, %p157
    %p159 = scmp.ne.s32.totalorder %s145, %s146
    %p160 = scmp.eq.s32.totalorder %s18, 1
    %p161 = por %p159, %p160
    %p163 = scmp.ne.s32.totalorder %s146, %s162
    %p164 = scmp.eq.s32.totalorder %s18, 0
    %p165 = por %p163, %p164
    %p166 = scmp.le.s32.totalorder 1, %s12
    %p167 = scmp.lt.s32.totalorder %s12, 3
    %p168 = pnand %p166, %p167
    %p169 = pneg %p168
    // Predicated region
    $region9: #{scale_output_forward.3} parent=5 // pred_check
      _
    $region10: #{scale_output_forward.3} parent=5 // pred_check_branch
      %171 = sbr.rel (%p168) target = $region12
    $region11: #{scale_output_forward.3} parent=5 // pred_region
      %s172 = ssub.s32 %s12, 1
      // Predicated region
      $region13: #{scale_output_forward.3} parent=11 // pred_check
        %p173 = pneg %p59
      $region14: #{scale_output_forward.3} parent=11 // pred_check_branch
        %175 = sbr.rel (%p173) target = $region16
      $region15: #{scale_output_forward.3} parent=11 // pred_region
        _
      $region16: #{scale_output_forward.3} parent=11 // pred_fallthru
        _
      // Predicated region
      $region17: #{scale_output_forward.3} parent=11 // pred_check
        %p176 = pneg %p80
      $region18: #{scale_output_forward.3} parent=11 // pred_check_branch
        %178 = sbr.rel (%p176) target = $region20
      $region19: #{scale_output_forward.3} parent=11 // pred_region
        _
      $region20: #{scale_output_forward.3} parent=11 // pred_fallthru
        _
    $region12: #{scale_output_forward.3} parent=5 // pred_fallthru
      _
    %p179 = scmp.lt.s32.totalorder %s12, 2
    // Predicated region
    $region21: #{scale_output_forward.3} parent=5 // pred_check
      %p180 = pneg %p179
    $region22: #{scale_output_forward.3} parent=5 // pred_check_branch
      %182 = sbr.rel (%p180) target = $region24
    $region23: #{scale_output_forward.3} parent=5 // pred_region
      // Predicated region
      $region25: #{scale_output_forward.3} parent=23 // pred_check
        %p183 = pneg %p32
      $region26: #{scale_output_forward.3} parent=23 // pred_check_branch
        %185 = sbr.rel (%p183) target = $region28
      $region27: #{scale_output_forward.3} parent=23 // pred_region
        %p186 = scmp.lt.s32.totalorder %s12, 1
        %s187 = scalar_select %p186, %s12, 1
        %s188 = smul.addr %s187, 2
        %s189 = smul.addr %s188, 4
        %s190 = scalar_lea.vmem %s0, %s189
      $region28: #{scale_output_forward.3} parent=23 // pred_fallthru
        _
    $region24: #{scale_output_forward.3} parent=5 // pred_fallthru
      _
    %p191 = scmp.le.s32.totalorder 1, %s12
    %p192 = scmp.lt.s32.totalorder %s12, 3
    %p193 = pnand %p191, %p192
    %p194 = pneg %p193
    // Predicated region
    $region29: #{scale_output_forward.3} parent=5 // pred_check
      _
    $region30: #{scale_output_forward.3} parent=5 // pred_check_branch
      %196 = sbr.rel (%p193) target = $region32
    $region31: #{scale_output_forward.3} parent=5 // pred_region
      %s197 = ssub.s32 %s12, 1
      %p198 = scmp.lt.s32.totalorder %s17, 1
      %s199 = scalar_select %p198, %s17, 1
      %s200 = smul.addr %s199, 2
      %s201 = smul.addr %s200, 4
      %s202 = scalar_lea.vmem %s0, %s201
      %p203 = pneg %p38
      %p204 = pneg %p35
      %p205 = pneg %p59
      %p206 = pneg %p56
      %p207 = pneg %p80
      %p208 = pneg %p77
      %p209 = pneg %p106
      %p210 = pneg %p103
      %p211 = scmp.lt.s32.totalorder %s17, 1
      %s212 = scalar_select %p211, %s17, 1
      %s213 = smul.addr %s212, 2
      %s214 = smul.addr %s213, 8
      %s215 = scalar_lea.vmem %s3, %s214
      %p216 = pneg %p132
      %p217 = pneg %p129
      %p218 = scmp.lt.s32.totalorder %s17, 1
      %s219 = scalar_select %p218, %s17, 1
      %s220 = smul.addr %s219, 8
      %s221 = scalar_lea.vmem %s4, %s220
      %p222 = pneg %p158
      %p223 = pneg %p155
      %p224 = scmp.lt.s32.totalorder %s17, 1
      %s225 = scalar_select %p224, %s17, 1
      %s226 = smul.addr %s225, 8
      %s227 = scalar_lea.vmem %s5, %s226
      %p228 = scmp.lt.s32.totalorder %s17, 1
      %s229 = scalar_select %p228, %s17, 1
      %s230 = smul.addr %s229, 2
      %s231 = smul.addr %s230, 4
      %s232 = scalar_lea.vmem %s0, %s231
      %p233 = scmp.lt.s32.totalorder %s17, 1
      %s234 = scalar_select %p233, %s17, 1
      %s235 = smul.addr %s234, 2
      %s236 = smul.addr %s235, 8
      %s237 = scalar_lea.vmem %s3, %s236
      %p238 = scmp.lt.s32.totalorder %s17, 1
      %s239 = scalar_select %p238, %s17, 1
      %s240 = smul.addr %s239, 8
      %s241 = scalar_lea.vmem %s4, %s240
      %p242 = scmp.lt.s32.totalorder %s17, 1
      %s243 = scalar_select %p242, %s17, 1
      %s244 = smul.addr %s243, 8
      %s245 = scalar_lea.vmem %s5, %s244
      %v247 = vld [vmem:[%s232] sm:$0xff]
      %v249 = vcombine.high %v247, %v247
      %251 = vrot.lane.b32.xlu0 %v247, 17
      %v252 = vpop.permute.xlu0 %251
      %253 = vrot.lane.b32.xlu0 %v249, 17
      %v254 = vpop.permute.xlu0 %253
      %v255 = vlaneseq
      %v256 = vand.u32 %v255, 127
      %vm257 = vcmp.lt.s32.totalorder %v256, 17
      %v258 = vsel %vm257, %v252, %v254
      %v259 = vsel %vm257, %v254, %v252
      %v260 = vld [vmem:[%s1] ss:$8 sm:$0x3]
      %v262 = vlaneseq
      %v263 = vshrl.u32 %v262, 7
      %v264 = vsub.s32 0, %v263
      %v265 = vrot.slane %v260, %v264
      %v266 = vlaneseq
      %v267 = vshrl.u32 %v266, 7
      %v268 = vsub.s32 1, %v267
      %v269 = vrot.slane %v260, %v268
      %v272 = vmul.f32 %v259, %v265
      %v273 = vmul.f32 %v258, %v269
      %274 = vst [vmem:[#allocation2] sm:$0xf] %v272
      %275 = vst [vmem:[#allocation2 + $0x8] sm:$0xf] %v273
      %276 = vrot.lane.b32.xlu0 %v247, 16
      %v277 = vpop.permute.xlu0 %276
      %278 = vrot.lane.b32.xlu0 %v249, 16
      %v279 = vpop.permute.xlu0 %278
      %vm280 = vcmp.lt.s32.totalorder %v256, 16
      %v281 = vsel %vm280, %v277, %v279
      %v282 = vsel %vm280, %v279, %v277
      %s283 = scalar_lea.vmem %s1, 1
      %v284 = vld [vmem:[%s283] ss:$8 sm:$0x3]
      %v286 = vlaneseq
      %v287 = vshrl.u32 %v286, 7
      %v288 = vsub.s32 0, %v287
      %v289 = vrot.slane %v284, %v288
      %v290 = vlaneseq
      %v291 = vshrl.u32 %v290, 7
      %v292 = vsub.s32 1, %v291
      %v293 = vrot.slane %v284, %v292
      %v296 = vmul.f32 %v282, %v289
      %v297 = vmul.f32 %v281, %v293
      %v300 = vrot.slane %v296, 4
      %v301 = vrot.slane %v297, 4
      %304 = vst [vmem:[#allocation2] sm:$0xf0] %v300
      %305 = vst [vmem:[#allocation2 + $0x8] sm:$0xf0] %v301
      %306 = vrot.lane.b32.xlu0 %v247, 15
      %v307 = vpop.permute.xlu0 %306
      %308 = vrot.lane.b32.xlu0 %v249, 15
      %v309 = vpop.permute.xlu0 %308
      %vm310 = vcmp.lt.s32.totalorder %v256, 15
      %v311 = vsel %vm310, %v307, %v309
      %v312 = vsel %vm310, %v309, %v307
      %s313 = scalar_lea.vmem %s1, 2
      %v314 = vld [vmem:[%s313] ss:$8 sm:$0x3]
      %v316 = vlaneseq
      %v317 = vshrl.u32 %v316, 7
      %v318 = vsub.s32 0, %v317
      %v319 = vrot.slane %v314, %v318
      %v320 = vlaneseq
      %v321 = vshrl.u32 %v320, 7
      %v322 = vsub.s32 1, %v321
      %v323 = vrot.slane %v314, %v322
      %v326 = vmul.f32 %v312, %v319
      %v327 = vmul.f32 %v311, %v323
      %328 = vst [vmem:[#allocation2 + $0x10] sm:$0xf] %v326
      %329 = vst [vmem:[#allocation2 + $0x18] sm:$0xf] %v327
      %330 = vrot.lane.b32.xlu0 %v247, 1
      %v331 = vpop.permute.xlu0 %330
      %332 = vrot.lane.b32.xlu0 %v249, 1
      %v333 = vpop.permute.xlu0 %332
      %vm334 = vcmp.lt.s32.totalorder %v256, 1
      %v335 = vsel %vm334, %v331, %v333
      %v336 = vsel %vm334, %v333, %v331
      %s337 = scalar_lea.vmem %s1, 3
      %v338 = vld [vmem:[%s337] ss:$8 sm:$0x3]
      %v340 = vlaneseq
      %v341 = vshrl.u32 %v340, 7
      %v342 = vsub.s32 0, %v341
      %v343 = vrot.slane %v338, %v342
      %v344 = vlaneseq
      %v345 = vshrl.u32 %v344, 7
      %v346 = vsub.s32 1, %v345
      %v347 = vrot.slane %v338, %v346
      %v350 = vmul.f32 %v336, %v343
      %v351 = vmul.f32 %v335, %v347
      %v354 = vrot.slane %v350, 4
      %v355 = vrot.slane %v351, 4
      %358 = vst [vmem:[#allocation2 + $0x10] sm:$0xf0] %v354
      %359 = vst [vmem:[#allocation2 + $0x18] sm:$0xf0] %v355
      %360 = vst [vmem:[#allocation2 + $0x20] sm:$0xf] %v247
      %361 = vst [vmem:[#allocation2 + $0x28] sm:$0xf] %v249
      %362 = vrot.lane.b32.xlu0 %v247, 127
      %v363 = vpop.permute.xlu0 %362
      %364 = vrot.lane.b32.xlu0 %v249, 127
      %v365 = vpop.permute.xlu0 %364
      %vm366 = vcmp.lt.s32.totalorder %v256, 127
      %v367 = vsel %vm366, %v363, %v365
      %v368 = vsel %vm366, %v365, %v363
      %s369 = scalar_lea.vmem %s1, 5
      %v370 = vld [vmem:[%s369] ss:$8 sm:$0x3]
      %v372 = vlaneseq
      %v373 = vshrl.u32 %v372, 7
      %v374 = vsub.s32 0, %v373
      %v375 = vrot.slane %v370, %v374
      %v376 = vlaneseq
      %v377 = vshrl.u32 %v376, 7
      %v378 = vsub.s32 1, %v377
      %v379 = vrot.slane %v370, %v378
      %v382 = vmul.f32 %v367, %v375
      %v383 = vmul.f32 %v368, %v379
      %v386 = vrot.slane %v382, 4
      %v387 = vrot.slane %v383, 4
      %390 = vst [vmem:[#allocation2 + $0x20] sm:$0xf0] %v386
      %391 = vst [vmem:[#allocation2 + $0x28] sm:$0xf0] %v387
      %392 = vrot.lane.b32.xlu0 %v247, 113
      %v393 = vpop.permute.xlu0 %392
      %394 = vrot.lane.b32.xlu0 %v249, 113
      %v395 = vpop.permute.xlu0 %394
      %vm396 = vcmp.lt.s32.totalorder %v256, 113
      %v397 = vsel %vm396, %v393, %v395
      %v398 = vsel %vm396, %v395, %v393
      %s399 = scalar_lea.vmem %s1, 6
      %v400 = vld [vmem:[%s399] ss:$8 sm:$0x3]
      %v402 = vlaneseq
      %v403 = vshrl.u32 %v402, 7
      %v404 = vsub.s32 0, %v403
      %v405 = vrot.slane %v400, %v404
      %v406 = vlaneseq
      %v407 = vshrl.u32 %v406, 7
      %v408 = vsub.s32 1, %v407
      %v409 = vrot.slane %v400, %v408
      %v412 = vmul.f32 %v397, %v405
      %v413 = vmul.f32 %v398, %v409
      %414 = vst [vmem:[#allocation2 + $0x30] sm:$0xf] %v412
      %415 = vst [vmem:[#allocation2 + $0x38] sm:$0xf] %v413
      %416 = vrot.lane.b32.xlu0 %v247, 112
      %v417 = vpop.permute.xlu0 %416
      %418 = vrot.lane.b32.xlu0 %v249, 112
      %v419 = vpop.permute.xlu0 %418
      %vm420 = vcmp.lt.s32.totalorder %v256, 112
      %v421 = vsel %vm420, %v417, %v419
      %v422 = vsel %vm420, %v419, %v417
      %s423 = scalar_lea.vmem %s1, 7
      %v424 = vld [vmem:[%s423] ss:$8 sm:$0x3]
      %v426 = vlaneseq
      %v427 = vshrl.u32 %v426, 7
      %v428 = vsub.s32 0, %v427
      %v429 = vrot.slane %v424, %v428
      %v430 = vlaneseq
      %v431 = vshrl.u32 %v430, 7
      %v432 = vsub.s32 1, %v431
      %v433 = vrot.slane %v424, %v432
      %v436 = vmul.f32 %v421, %v429
      %v437 = vmul.f32 %v422, %v433
      %v440 = vrot.slane %v436, 4
      %v441 = vrot.slane %v437, 4
      %444 = vst [vmem:[#allocation2 + $0x30] sm:$0xf0] %v440
      %445 = vst [vmem:[#allocation2 + $0x38] sm:$0xf0] %v441
      %446 = vrot.lane.b32.xlu0 %v247, 111
      %v447 = vpop.permute.xlu0 %446
      %448 = vrot.lane.b32.xlu0 %v249, 111
      %v449 = vpop.permute.xlu0 %448
      %vm450 = vcmp.lt.s32.totalorder %v256, 111
      %v451 = vsel %vm450, %v447, %v449
      %v452 = vsel %vm450, %v449, %v447
      %s453 = scalar_lea.vmem %s1, 16
      %v454 = vld [vmem:[%s453] ss:$8 sm:$0x3]
      %v456 = vlaneseq
      %v457 = vshrl.u32 %v456, 7
      %v458 = vsub.s32 0, %v457
      %v459 = vrot.slane %v454, %v458
      %v460 = vlaneseq
      %v461 = vshrl.u32 %v460, 7
      %v462 = vsub.s32 1, %v461
      %v463 = vrot.slane %v454, %v462
      %v466 = vmul.f32 %v451, %v459
      %v467 = vmul.f32 %v452, %v463
      %468 = vst [vmem:[#allocation2 + $0x40] sm:$0xf] %v466
      %469 = vst [vmem:[#allocation2 + $0x48] sm:$0xf] %v467
      %v470 = vld [vmem:[%s2] sm:$0xf]
      %v471 = vld [vmem:[#allocation2] sm:$0xff]
      %v472 = vld [vmem:[#allocation2 + $0x8] sm:$0xff]
      %v473 = vld [vmem:[#allocation2 + $0x10] sm:$0xff]
      %v474 = vld [vmem:[#allocation2 + $0x18] sm:$0xff]
      %v475 = vld [vmem:[#allocation2 + $0x20] sm:$0xff]
      %v476 = vld [vmem:[#allocation2 + $0x28] sm:$0xff]
      %v477 = vld [vmem:[#allocation2 + $0x30] sm:$0xff]
      %v478 = vld [vmem:[#allocation2 + $0x38] sm:$0xff]
      %v479 = vld [vmem:[#allocation2 + $0x40] sm:$0xf]
      %v480 = vld [vmem:[#allocation2 + $0x48] sm:$0xf]
      %v481 = vpack.c.bf16 %v473, %v471
      %v482 = vpack.c.bf16 %v474, %v472
      %v483 = vpack.c.bf16 %v477, %v475
      %v484 = vpack.c.bf16 %v478, %v476
      %v485 = vpack.c.bf16 %v479, %v479
      %v486 = vpack.c.bf16 %v480, %v480
      %vm487 = vcmask 293888
      %v489 = vsel %vm487, %v470, 0
      %vm491 = vcmask 1041408
      %v493 = vsel %vm491, %v485, 0
      %v496 = vsel %vm491, %v486, 0
      %498 = vmatprep.subr.bf16.mxu0 0
      %499 = vmatpush1.bf16.msra.mxu0 0
      %500 = vmatprep.subr.bf16.mxu0 0
      %501 = vmatpush1.bf16.msra.mxu0 0
      %502 = vmatprep.subr.bf16.mxu0 0
      %503 = vmatpush1.bf16.msra.mxu0 0
      %504 = vmatprep.subr.bf16.mxu0 0
      %505 = vmatpush1.bf16.msra.mxu0 0
      %506 = vmatprep.subr.bf16.mxu0 0
      %507 = vmatpush1.bf16.msra.mxu0 0
      %508 = vmatprep.subr.bf16.mxu0 %v496
      %509 = vmatpush1.bf16.msra.mxu0 %v493
      %510 = vmatprep.subr.bf16.mxu0 %v484
      %511 = vmatpush1.bf16.msra.mxu0 %v483
      %512 = vmatprep.subr.bf16.mxu0 %v482
      %513 = vmatpush1.bf16.msra.mxu0 %v481
      %514 = vmatprep.subr.bf16.mxu0 0
      %515 = vmatpush2.bf16.msra.mxu0 0
      %516 = vmatprep.subr.bf16.mxu0 0
      %517 = vmatpush2.bf16.msra.mxu0 0
      %518 = vmatprep.subr.bf16.mxu0 0
      %519 = vmatpush2.bf16.msra.mxu0 0
      %520 = vmatprep.subr.bf16.mxu0 0
      %521 = vmatpush2.bf16.msra.mxu0 0
      %522 = vmatprep.subr.bf16.mxu0 0
      %523 = vmatpush2.bf16.msra.mxu0 0
      %524 = vmatprep.subr.bf16.mxu0 0
      %525 = vmatpush2.bf16.msra.mxu0 0
      %526 = vmatprep.subr.bf16.mxu0 0
      %527 = vmatpush2.bf16.msra.mxu0 0
      %528 = vmatprep.subr.bf16.mxu0 0
      %529 = vmatpush2.bf16.msra.mxu0 0
      %530 = vmatprep.mubr.bf16.mxu0 0
      %531 = vmatmul.mubr.bf16.gmra.mxu0 %v489
      %v532 = vpop.f32.mrf.mxu0
      %v533 = vadd.f32 0.0, %v532
      %v534 = vpop.f32.mrf.mxu0
      %v535 = vadd.f32 0.0, %v534
      %v536 = vpop.f32.mrf.mxu0
      %v537 = vpop.f32.mrf.mxu0
      %538 = vdwg.mxu0
      %539 = vst [vmem:[%s237] sm:$0xff] %v533
      %540 = vst [vmem:[%s237 + $0x8] sm:$0xff] %v535
      %v541 = vadd.f32 %v533, %v535
      %542 = vadd.xlane.f32.xlu0 %v541
      %v543 = vpop.xlane.xlu0 %542
      %vm544 = vcmask 7168
      %545 = vst.msk [vmem:[%s241] sm:$0xff] %vm544, %v543
      %v546 = vmul.f32 %v533, %v533
      %v547 = vmul.f32 %v535, %v535
      %v548 = vadd.f32 %v546, %v547
      %549 = vadd.xlane.f32.xlu0 %v548
      %v550 = vpop.xlane.xlu0 %549
      %551 = vst.msk [vmem:[%s245] sm:$0xff] %vm544, %v550
      %p552 = scmp.lt.s32.totalorder %s17, 1
      %s553 = scalar_select %p552, %s17, 1
      %s554 = smul.addr %s553, 2
      %s555 = smul.addr %s554, 8
      %s556 = scalar_lea.vmem %s3, %s555
      %p557 = scmp.lt.s32.totalorder %s17, 1
      %s558 = scalar_select %p557, %s17, 1
      %s559 = smul.addr %s558, 8
      %s560 = scalar_lea.vmem %s4, %s559
      %p561 = scmp.lt.s32.totalorder %s17, 1
      %s562 = scalar_select %p561, %s17, 1
      %s563 = smul.addr %s562, 8
      %s564 = scalar_lea.vmem %s5, %s563
      // Predicated region
      $region33: #{scale_output_forward.3} parent=31 // pred_check
        %p565 = pneg %p103
      $region34: #{scale_output_forward.3} parent=31 // pred_check_branch
        %567 = sbr.rel (%p565) target = $region36
      $region35: #{scale_output_forward.3} parent=31 // pred_region
        _
      $region36: #{scale_output_forward.3} parent=31 // pred_fallthru
        _
      // Predicated region
      $region37: #{scale_output_forward.3} parent=31 // pred_check
        %p568 = pneg %p129
      $region38: #{scale_output_forward.3} parent=31 // pred_check_branch
        %570 = sbr.rel (%p568) target = $region40
      $region39: #{scale_output_forward.3} parent=31 // pred_region
        _
      $region40: #{scale_output_forward.3} parent=31 // pred_fallthru
        _
      // Predicated region
      $region41: #{scale_output_forward.3} parent=31 // pred_check
        %p571 = pneg %p155
      $region42: #{scale_output_forward.3} parent=31 // pred_check_branch
        %573 = sbr.rel (%p571) target = $region44
      $region43: #{scale_output_forward.3} parent=31 // pred_region
        _
      $region44: #{scale_output_forward.3} parent=31 // pred_fallthru
        _
    $region32: #{scale_output_forward.3} parent=5 // pred_fallthru
      _
    %p574 = scmp.le.s32.totalorder 2, %s12
    // Predicated region
    $region45: #{scale_output_forward.3} parent=5 // pred_check
      %p575 = pneg %p574
    $region46: #{scale_output_forward.3} parent=5 // pred_check_branch
      %577 = sbr.rel (%p575) target = $region48
    $region47: #{scale_output_forward.3} parent=5 // pred_region
      %s578 = ssub.s32 %s12, 2
      // Predicated region
      $region49: #{scale_output_forward.3} parent=47 // pred_check
        %p579 = pneg %p109
      $region50: #{scale_output_forward.3} parent=47 // pred_check_branch
        %581 = sbr.rel (%p579) target = $region52
      $region51: #{scale_output_forward.3} parent=47 // pred_region
        %p582 = scmp.lt.s32.totalorder %s18, 1
        %s583 = scalar_select %p582, %s18, 1
        %s584 = smul.addr %s583, 2
        %s585 = smul.addr %s584, 8
        %s586 = scalar_lea.vmem %s3, %s585
      $region52: #{scale_output_forward.3} parent=47 // pred_fallthru
        _
      // Predicated region
      $region53: #{scale_output_forward.3} parent=47 // pred_check
        %p587 = pneg %p135
      $region54: #{scale_output_forward.3} parent=47 // pred_check_branch
        %589 = sbr.rel (%p587) target = $region56
      $region55: #{scale_output_forward.3} parent=47 // pred_region
        %p590 = scmp.lt.s32.totalorder %s18, 1
        %s591 = scalar_select %p590, %s18, 1
        %s592 = smul.addr %s591, 8
        %s593 = scalar_lea.vmem %s4, %s592
      $region56: #{scale_output_forward.3} parent=47 // pred_fallthru
        _
      // Predicated region
      $region57: #{scale_output_forward.3} parent=47 // pred_check
        %p594 = pneg %p161
      $region58: #{scale_output_forward.3} parent=47 // pred_check_branch
        %596 = sbr.rel (%p594) target = $region60
      $region59: #{scale_output_forward.3} parent=47 // pred_region
        %p597 = scmp.lt.s32.totalorder %s18, 1
        %s598 = scalar_select %p597, %s18, 1
        %s599 = smul.addr %s598, 8
        %s600 = scalar_lea.vmem %s5, %s599
      $region60: #{scale_output_forward.3} parent=47 // pred_fallthru
        _
    $region48: #{scale_output_forward.3} parent=5 // pred_fallthru
      _
  $region6: #{scale_output_forward.3} parent=0 // loop_footer
    %s16 = sadd.s32 1, %s12
  $region7: #{scale_output_forward.3} parent=0 // loop_footer_branch
    %11 = sbr.rel target = $region3
  $region8: #{scale_output_forward.3} parent=0 // loop_exit
    _

</llo_original>
